<compile_context>
chip_gen: v6e
topology: v6e:2x2x1
jax: 0.10.0
libtpu: 0.0.40
codegen_flags: <defaults>
</compile_context>

<pallas_src>
import functools

import jax
import jax.numpy as jnp
from jax.experimental import pallas as pl
from jax.experimental.pallas import tpu as pltpu


def _round_up(x, m):
    return -(-x // m) * m


def _num_tensorcores():
    """Best-effort count of TensorCores per device (v7x/megacore chips -> 2)."""
    try:
        d = jax.devices()[0]
        nc = getattr(d, "num_cores", None)
        if nc:
            return int(nc)
        kind = str(getattr(d, "device_kind", "")).lower()
        if "v4" in kind or "v5p" in kind or "v7" in kind or "7x" in kind:
            return 2
    except Exception:
        pass
    return 1


def _pick_tile_p(p, tile_p, ntc):
    """Pixel-axis lane tile: multiple of 128, as large as requested; only cap it
    (to keep >= ntc grid steps for cross-core sharding) on multi-TC chips."""
    tile = max(128, (tile_p // 128) * 128)
    p128 = _round_up(max(p, 1), 128)
    tile = min(tile, p128)
    if ntc > 1 and p128 >= ntc * 128:
        per_core = _round_up(-(-p128 // ntc), 128)
        tile = min(tile, per_core)
    return tile


def mesh_texture_kernel(uv_ref, lhs_ref, tbl_ref, out_ref, *, c, ks, activation):
    # uv_ref : (2, TP)      raw uv in [0,1]; row 0 = u -> x/width, row 1 = v -> y/height
    # lhs_ref: (C*Ks, Ks)   resident block-diagonal texel matrix (channel-major rows)
    # tbl_ref: (Ks, 2)      merged per-row table: [:,0] level extent s, [:,1] texel idx + 0.5
    # out_ref: (C_pad, TP)  C padded to 8 for unmasked stores
    uv = uv_ref[...]
    u = uv[0:1, :]                                    # (1, TP)
    v = uv[1:2, :]                                    # (1, TP)
    ext = tbl_ref[:, 0:1]                             # (Ks, 1); 0 on pad rows
    ctr = tbl_ref[:, 1:2]                             # (Ks, 1); sentinel on pad rows
    # grid_sample(align_corners=False): ix = s*u - 0.5, tent = relu(1 - |sx - ix|)
    #   => weight = relu(1 - |(sx + 0.5) - s*u|)  (square levels: same table for x and y)
    wx = jnp.maximum(1.0 - jnp.abs(ctr - ext * u), 0.0)    # (Ks, TP)
    wy = jnp.maximum(1.0 - jnp.abs(ctr - ext * v), 0.0)    # (Ks, TP)
    # One MXU matmul contracts the sx axis of every level at once.
    t = jnp.dot(lhs_ref[...], wx, preferred_element_type=jnp.float32)  # (C*Ks, TP)
    rows = []
    for ci in range(c):                                # static unroll over channels
        part = t[ci * ks:(ci + 1) * ks, :] * wy        # (Ks, TP)
        rows.append(jnp.sum(part, axis=0, keepdims=True))
    acc = jnp.concatenate(rows, axis=0)                # (C, TP)
    if activation == "sigmoid":
        acc = jax.nn.sigmoid(acc)
    elif activation == "tanh":
        acc = jnp.tanh(acc)
    c_pad = out_ref.shape[0]
    if c_pad > c:
        acc = jnp.concatenate(
            [acc, jnp.zeros((c_pad - c, acc.shape[1]), acc.dtype)], axis=0)
    out_ref[...] = acc


def mesh_texture_forward(inputs, textures, *, activation="none", tile_p=1024):
    """inputs: (N, Cin>=2, H, W) float32, first 2 channels are UV in [0, 1].
    textures: list of (1, C, s_i, s_i) float32 arrays (the module's texture_i)."""
    n, cin, h, w = inputs.shape
    assert cin >= 2
    sizes = [int(t.shape[-1]) for t in textures]
    c = int(textures[0].shape[1])

    # ---- pixel plumbing: (N, 2, H, W) -> (2, P), P ordered (n, h, w) ----
    p = n * h * w
    ntc = _num_tensorcores()
    tile = _pick_tile_p(p, tile_p, ntc)
    p_pad = _round_up(p, tile)
    uv = jnp.transpose(inputs[:, :2].astype(jnp.float32), (1, 0, 2, 3)).reshape(2, p)
    uv = jnp.pad(uv, ((0, 0), (0, p_pad - p)))

    # ---- resident block-diagonal LHS and merged (Ks, 2) table ----
    # NOTE: assumes square levels (always true for MeshTexture), so one table
    # serves both the x (columns) and y (row-group) axes.
    s_sum = sum(sizes)
    ks = _round_up(s_sum, 8)
    lhs = jnp.zeros((c * ks, ks), jnp.float32)
    off = 0
    for texl, s in zip(textures, sizes):
        tf = jnp.asarray(texl, jnp.float32)[0]          # (C, s, s) = (C, sy, sx)
        for ci in range(c):
            lhs = lhs.at[ci * ks + off: ci * ks + off + s, off: off + s].set(tf[ci])
        off += s
    ext_rows = jnp.concatenate([jnp.full((s,), float(s), jnp.float32) for s in sizes])
    ctr_rows = jnp.concatenate([jnp.arange(s, dtype=jnp.float32) + 0.5 for s in sizes])
    pad = ks - s_sum
    ext_rows = jnp.pad(ext_rows, (0, pad))                        # extent 0 -> weight 0
    ctr_rows = jnp.pad(ctr_rows, (0, pad), constant_values=2.0)   # sentinel -> weight 0
    tbl = jnp.stack([ext_rows, ctr_rows], axis=1)                 # (Ks, 2)

    c_pad = _round_up(c, 8)

    # ---- explicit VMEM budget (resident + double-buffered streams + temporaries) ----
    f32 = 4
    resident = (c * ks * ks + ks * 128) * f32
    streams = 2 * (8 + c_pad) * tile * f32
    temps = (2 * ks + c * ks + 2 * c_pad) * tile * f32
    vmem_limit = int(min(64 * 1024 * 1024,
                         2 * (resident + streams + temps) + (8 << 20)))

    kernel = functools.partial(mesh_texture_kernel, c=c, ks=ks, activation=activation)

    def build(single_buffer_constants):
        def const_spec(shape):
            kwargs = {}
            if single_buffer_constants:
                kwargs["pipeline_mode"] = pl.Buffered(1)
            return pl.BlockSpec(shape, lambda i: (0, 0), **kwargs)

        return pl.pallas_call(
            kernel,
            out_shape=jax.ShapeDtypeStruct((c_pad, p_pad), jnp.float32),
            grid_spec=pltpu.PrefetchScalarGridSpec(
                num_scalar_prefetch=0,
                grid=(p_pad // tile,),
                in_specs=[
                    pl.BlockSpec((2, tile), lambda i: (0, i)),
                    const_spec((c * ks, ks)),     # resident texel matrix
                    const_spec((ks, 2)),          # resident merged table
                ],
                out_specs=pl.BlockSpec((c_pad, tile), lambda i: (0, i)),
            ),
            compiler_params=pltpu.CompilerParams(
                dimension_semantics=("parallel",),
                vmem_limit_bytes=vmem_limit),
        )

    try:
        out_flat = build(hasattr(pl, "Buffered"))(uv, lhs, tbl)
    except Exception:
        # Fall back if this JAX build rejects pipeline_mode=Buffered(1).
        out_flat = build(False)(uv, lhs, tbl)

    out = out_flat[:c, :p].reshape(c, n, h, w)
    return jnp.transpose(out, (1, 0, 2, 3))             # back to NCHW like torch


def mesh_texture_ref(inputs, textures, activation="none"):
    """Pure-JAX reference mirroring torch grid_sample (bilinear, zeros, align_corners=False)."""
    uv = jnp.transpose(inputs[:, :2], (0, 2, 3, 1)) * 2.0 - 1.0   # (N, H, W, 2)
    x = uv[..., 0]
    y = uv[..., 1]
    out = 0.0
    for t in textures:
        tex = t[0]                                # (C, Ht, Wt)
        ht, wt = tex.shape[1], tex.shape[2]
        ix = ((x + 1.0) * wt - 1.0) * 0.5
        iy = ((y + 1.0) * ht - 1.0) * 0.5
        x0 = jnp.floor(ix).astype(jnp.int32)
        y0 = jnp.floor(iy).astype(jnp.int32)
        x1 = x0 + 1
        y1 = y0 + 1
        wx1 = ix - x0
        wx0 = 1.0 - wx1
        wy1 = iy - y0
        wy0 = 1.0 - wy1

        def samp(xc, yc, wgt):
            valid = (xc >= 0) & (xc < wt) & (yc >= 0) & (yc < ht)
            xcc = jnp.clip(xc, 0, wt - 1)
            ycc = jnp.clip(yc, 0, ht - 1)
            val = tex[:, ycc, xcc]                # (C, N, H, W)
            return jnp.where(valid[None], val, 0.0) * wgt[None]

        s = (samp(x0, y0, wx0 * wy0) + samp(x1, y0, wx1 * wy0)
             + samp(x0, y1, wx0 * wy1) + samp(x1, y1, wx1 * wy1))
        out = out + jnp.transpose(s, (1, 0, 2, 3))
    if activation == "sigmoid":
        out = jax.nn.sigmoid(out)
    elif activation == "tanh":
        out = jnp.tanh(out)
    return out


if __name__ == "__main__":
    # MeshTexture(num_channels=4, size=16, activation='none', init_method='rand', levels=4)
    num_channels, size, levels = 4, 16, 4
    n, cin, h, w = 2, 3, 16, 16

    key = jax.random.PRNGKey(0)
    keys = jax.random.split(key, 1 + levels)
    inputs = jax.random.uniform(keys[0], (n, cin, h, w), jnp.float32)   # UV in [0, 1]
    textures = [
        jax.random.uniform(keys[1 + i],
                           (1, num_channels, size // 2 ** i, size // 2 ** i),
                           jnp.float32)
        for i in range(levels)
    ]  # deterministic stand-in for init_method='rand'

    out = mesh_texture_forward(inputs, textures, activation="none")
    out = jax.block_until_ready(out)

    ref = mesh_texture_ref(inputs, textures, activation="none")
    assert out.shape == (n, num_channels, h, w), out.shape
    max_err = float(jnp.max(jnp.abs(out - ref)))
    assert max_err < 1e-4, f"mismatch vs reference: {max_err}"
    print("KERNEL_OK")
</pallas_src>

<mosaic_0001>
module attributes {stable_mosaic.version = 11 : i64} {
  func.func @mesh_texture_kernel(%arg0: i32, %arg1: memref<2x512xf32, #tpu.memory_space<vmem>>, %arg2: memref<128x32xf32, #tpu.memory_space<vmem>>, %arg3: memref<32x2xf32, #tpu.memory_space<vmem>>, %arg4: memref<8x512xf32, #tpu.memory_space<vmem>>) attributes {dimension_semantics = [#tpu.dimension_semantics<parallel>], iteration_bounds = array<i64: 1>, scalar_prefetch = 0 : i64, scratch_operands = 0 : i64, tpu.core_type = #tpu.core_type<tc>, window_params = [{transform_indices = @transform_0, window_bounds = array<i64: 2, 512>}, {pipeline_mode = #tpu.pipeline_mode<synchronous>, transform_indices = @transform_1, window_bounds = array<i64: 128, 32>}, {pipeline_mode = #tpu.pipeline_mode<synchronous>, transform_indices = @transform_2, window_bounds = array<i64: 32, 2>}, {transform_indices = @transform_3, window_bounds = array<i64: 8, 512>}]} {
    %c0 = arith.constant 0 : index
    %c0_0 = arith.constant 0 : index
    %0 = vector.load %arg1[%c0, %c0_0] : memref<2x512xf32, #tpu.memory_space<vmem>>, vector<2x512xf32>
    %1 = vector.extract_strided_slice %0 {offsets = [0, 0], sizes = [1, 512], strides = [1, 1]} : vector<2x512xf32> to vector<1x512xf32>
    %2 = vector.extract_strided_slice %0 {offsets = [1, 0], sizes = [1, 512], strides = [1, 1]} : vector<2x512xf32> to vector<1x512xf32>
    %c0_1 = arith.constant 0 : index
    %c0_2 = arith.constant 0 : index
    %3 = vector.load %arg3[%c0_1, %c0_2] : memref<32x2xf32, #tpu.memory_space<vmem>>, vector<32x1xf32>
    %c0_3 = arith.constant 0 : index
    %c1 = arith.constant 1 : index
    %4 = vector.load %arg3[%c0_3, %c1] : memref<32x2xf32, #tpu.memory_space<vmem>>, vector<32x1xf32>
    %5 = vector.broadcast %3 : vector<32x1xf32> to vector<32x512xf32>
    %6 = vector.broadcast %1 : vector<1x512xf32> to vector<32x512xf32>
    %7 = arith.mulf %5, %6 : vector<32x512xf32>
    %8 = vector.broadcast %4 : vector<32x1xf32> to vector<32x512xf32>
    %9 = arith.subf %8, %7 : vector<32x512xf32>
    %10 = math.absf %9 : vector<32x512xf32>
    %cst = arith.constant 1.000000e+00 : f32
    %11 = vector.broadcast %cst : f32 to vector<32x512xf32>
    %12 = arith.subf %11, %10 : vector<32x512xf32>
    %cst_4 = arith.constant 0.000000e+00 : f32
    %13 = vector.broadcast %cst_4 : f32 to vector<32x512xf32>
    %14 = arith.maximumf %12, %13 : vector<32x512xf32>
    %15 = vector.broadcast %3 : vector<32x1xf32> to vector<32x512xf32>
    %16 = vector.broadcast %2 : vector<1x512xf32> to vector<32x512xf32>
    %17 = arith.mulf %15, %16 : vector<32x512xf32>
    %18 = vector.broadcast %4 : vector<32x1xf32> to vector<32x512xf32>
    %19 = arith.subf %18, %17 : vector<32x512xf32>
    %20 = math.absf %19 : vector<32x512xf32>
    %cst_5 = arith.constant 1.000000e+00 : f32
    %21 = vector.broadcast %cst_5 : f32 to vector<32x512xf32>
    %22 = arith.subf %21, %20 : vector<32x512xf32>
    %cst_6 = arith.constant 0.000000e+00 : f32
    %23 = vector.broadcast %cst_6 : f32 to vector<32x512xf32>
    %24 = arith.maximumf %22, %23 : vector<32x512xf32>
    %c0_7 = arith.constant 0 : index
    %c0_8 = arith.constant 0 : index
    %25 = vector.load %arg2[%c0_7, %c0_8] : memref<128x32xf32, #tpu.memory_space<vmem>>, vector<128x32xf32>
    %cst_9 = arith.constant dense<0.000000e+00> : vector<128x512xf32>
    %26 = tpu.matmul %25, %14, %cst_9 {dimension_numbers = #tpu.dot_dimension_numbers<[1], [0], [0], [1], [0, 0, 1, 1], [], []>} : vector<128x32xf32>, vector<32x512xf32>, vector<128x512xf32> -> vector<128x512xf32>
    %27 = vector.extract_strided_slice %26 {offsets = [0, 0], sizes = [32, 512], strides = [1, 1]} : vector<128x512xf32> to vector<32x512xf32>
    %28 = arith.mulf %27, %24 : vector<32x512xf32>
    %cst_10 = arith.constant dense<0.000000e+00> : vector<512xf32>
    %29 = vector.multi_reduction <add>, %28, %cst_10 [0] : vector<32x512xf32> to vector<512xf32>
    %30 = vector.shape_cast %29 : vector<512xf32> to vector<1x512xf32>
    %31 = vector.extract_strided_slice %26 {offsets = [32, 0], sizes = [32, 512], strides = [1, 1]} : vector<128x512xf32> to vector<32x512xf32>
    %32 = arith.mulf %31, %24 : vector<32x512xf32>
    %cst_11 = arith.constant dense<0.000000e+00> : vector<512xf32>
    %33 = vector.multi_reduction <add>, %32, %cst_11 [0] : vector<32x512xf32> to vector<512xf32>
    %34 = vector.shape_cast %33 : vector<512xf32> to vector<1x512xf32>
    %35 = vector.extract_strided_slice %26 {offsets = [64, 0], sizes = [32, 512], strides = [1, 1]} : vector<128x512xf32> to vector<32x512xf32>
    %36 = arith.mulf %35, %24 : vector<32x512xf32>
    %cst_12 = arith.constant dense<0.000000e+00> : vector<512xf32>
    %37 = vector.multi_reduction <add>, %36, %cst_12 [0] : vector<32x512xf32> to vector<512xf32>
    %38 = vector.shape_cast %37 : vector<512xf32> to vector<1x512xf32>
    %39 = vector.extract_strided_slice %26 {offsets = [96, 0], sizes = [32, 512], strides = [1, 1]} : vector<128x512xf32> to vector<32x512xf32>
    %40 = arith.mulf %39, %24 : vector<32x512xf32>
    %cst_13 = arith.constant dense<0.000000e+00> : vector<512xf32>
    %41 = vector.multi_reduction <add>, %40, %cst_13 [0] : vector<32x512xf32> to vector<512xf32>
    %42 = vector.shape_cast %41 : vector<512xf32> to vector<1x512xf32>
    %43 = tpu.concatenate %30, %34, %38, %42 in 0 : vector<1x512xf32>, vector<1x512xf32>, vector<1x512xf32>, vector<1x512xf32> -> vector<4x512xf32>
    %cst_14 = arith.constant 0.000000e+00 : f32
    %44 = vector.broadcast %cst_14 : f32 to vector<4x512xf32>
    %45 = tpu.concatenate %43, %44 in 0 : vector<4x512xf32>, vector<4x512xf32> -> vector<8x512xf32>
    %c0_15 = arith.constant 0 : index
    %c0_16 = arith.constant 0 : index
    %46 = vector.load %arg4[%c0_15, %c0_16] : memref<8x512xf32, #tpu.memory_space<vmem>>, vector<8x512xf32>
    tpu.vector_store %arg4[%c0_15, %c0_16], %45 {strides = array<i32>} : memref<8x512xf32, #tpu.memory_space<vmem>>, vector<8x512xf32>,
    return
  }
  func.func @transform_0(%arg0: i32) -> (i32, i32) {
    %c0_i32 = arith.constant 0 : i32
    %c0_i32_0 = arith.constant 0 : i32
    return %c0_i32, %arg0 : i32, i32
  }
  func.func @transform_1(%arg0: i32) -> (i32, i32) {
    %c0_i32 = arith.constant 0 : i32
    %c0_i32_0 = arith.constant 0 : i32
    %c0_i32_1 = arith.constant 0 : i32
    return %c0_i32, %c0_i32_0 : i32, i32
  }
  func.func @transform_2(%arg0: i32) -> (i32, i32) {
    %c0_i32 = arith.constant 0 : i32
    %c0_i32_0 = arith.constant 0 : i32
    %c0_i32_1 = arith.constant 0 : i32
    return %c0_i32, %c0_i32_0 : i32, i32
  }
  func.func @transform_3(%arg0: i32) -> (i32, i32) {
    %c0_i32 = arith.constant 0 : i32
    %c0_i32_0 = arith.constant 0 : i32
    return %c0_i32, %arg0 : i32, i32
  }
}

module attributes {stable_mosaic.version = 11 : i64} {
  func.func @mesh_texture_kernel(%arg0: i32, %arg1: memref<2x512xf32, #tpu.memory_space<vmem>>, %arg2: memref<128x32xf32, #tpu.memory_space<vmem>>, %arg3: memref<32x2xf32, #tpu.memory_space<vmem>>, %arg4: memref<8x512xf32, #tpu.memory_space<vmem>>) attributes {dimension_semantics = [#tpu.dimension_semantics<parallel>], iteration_bounds = array<i64: 1>, scalar_prefetch = 0 : i64, scratch_operands = 0 : i64, tpu.core_type = #tpu.core_type<tc>, window_params = [{transform_indices = @transform_0, window_bounds = array<i64: 2, 512>}, {pipeline_mode = #tpu.pipeline_mode<synchronous>, transform_indices = @transform_1, window_bounds = array<i64: 128, 32>}, {pipeline_mode = #tpu.pipeline_mode<synchronous>, transform_indices = @transform_2, window_bounds = array<i64: 32, 2>}, {transform_indices = @transform_3, window_bounds = array<i64: 8, 512>}]} {
    %c0 = arith.constant 0 : index
    %c0_0 = arith.constant 0 : index
    %0 = vector.load %arg1[%c0, %c0_0] : memref<2x512xf32, #tpu.memory_space<vmem>>, vector<2x512xf32>
    %1 = vector.extract_strided_slice %0 {offsets = [0, 0], sizes = [1, 512], strides = [1, 1]} : vector<2x512xf32> to vector<1x512xf32>
    %2 = vector.extract_strided_slice %0 {offsets = [1, 0], sizes = [1, 512], strides = [1, 1]} : vector<2x512xf32> to vector<1x512xf32>
    %c0_1 = arith.constant 0 : index
    %c0_2 = arith.constant 0 : index
    %3 = vector.load %arg3[%c0_1, %c0_2] : memref<32x2xf32, #tpu.memory_space<vmem>>, vector<32x1xf32>
    %c0_3 = arith.constant 0 : index
    %c1 = arith.constant 1 : index
    %4 = vector.load %arg3[%c0_3, %c1] : memref<32x2xf32, #tpu.memory_space<vmem>>, vector<32x1xf32>
    %5 = vector.broadcast %3 : vector<32x1xf32> to vector<32x512xf32>
    %6 = vector.broadcast %1 : vector<1x512xf32> to vector<32x512xf32>
    %7 = arith.mulf %5, %6 : vector<32x512xf32>
    %8 = vector.broadcast %4 : vector<32x1xf32> to vector<32x512xf32>
    %9 = arith.subf %8, %7 : vector<32x512xf32>
    %10 = math.absf %9 : vector<32x512xf32>
    %cst = arith.constant 1.000000e+00 : f32
    %11 = vector.broadcast %cst : f32 to vector<32x512xf32>
    %12 = arith.subf %11, %10 : vector<32x512xf32>
    %cst_4 = arith.constant 0.000000e+00 : f32
    %13 = vector.broadcast %cst_4 : f32 to vector<32x512xf32>
    %14 = arith.maximumf %12, %13 : vector<32x512xf32>
    %15 = vector.broadcast %3 : vector<32x1xf32> to vector<32x512xf32>
    %16 = vector.broadcast %2 : vector<1x512xf32> to vector<32x512xf32>
    %17 = arith.mulf %15, %16 : vector<32x512xf32>
    %18 = vector.broadcast %4 : vector<32x1xf32> to vector<32x512xf32>
    %19 = arith.subf %18, %17 : vector<32x512xf32>
    %20 = math.absf %19 : vector<32x512xf32>
    %cst_5 = arith.constant 1.000000e+00 : f32
    %21 = vector.broadcast %cst_5 : f32 to vector<32x512xf32>
    %22 = arith.subf %21, %20 : vector<32x512xf32>
    %cst_6 = arith.constant 0.000000e+00 : f32
    %23 = vector.broadcast %cst_6 : f32 to vector<32x512xf32>
    %24 = arith.maximumf %22, %23 : vector<32x512xf32>
    %c0_7 = arith.constant 0 : index
    %c0_8 = arith.constant 0 : index
    %25 = vector.load %arg2[%c0_7, %c0_8] : memref<128x32xf32, #tpu.memory_space<vmem>>, vector<128x32xf32>
    %cst_9 = arith.constant dense<0.000000e+00> : vector<128x512xf32>
    %26 = tpu.matmul %25, %14, %cst_9 {dimension_numbers = #tpu.dot_dimension_numbers<[1], [0], [0], [1], [0, 0, 1, 1], [], []>} : vector<128x32xf32>, vector<32x512xf32>, vector<128x512xf32> -> vector<128x512xf32>
    %27 = vector.extract_strided_slice %26 {offsets = [0, 0], sizes = [32, 512], strides = [1, 1]} : vector<128x512xf32> to vector<32x512xf32>
    %28 = arith.mulf %27, %24 : vector<32x512xf32>
    %cst_10 = arith.constant dense<0.000000e+00> : vector<512xf32>
    %29 = vector.multi_reduction <add>, %28, %cst_10 [0] : vector<32x512xf32> to vector<512xf32>
    %30 = vector.shape_cast %29 : vector<512xf32> to vector<1x512xf32>
    %31 = vector.extract_strided_slice %26 {offsets = [32, 0], sizes = [32, 512], strides = [1, 1]} : vector<128x512xf32> to vector<32x512xf32>
    %32 = arith.mulf %31, %24 : vector<32x512xf32>
    %cst_11 = arith.constant dense<0.000000e+00> : vector<512xf32>
    %33 = vector.multi_reduction <add>, %32, %cst_11 [0] : vector<32x512xf32> to vector<512xf32>
    %34 = vector.shape_cast %33 : vector<512xf32> to vector<1x512xf32>
    %35 = vector.extract_strided_slice %26 {offsets = [64, 0], sizes = [32, 512], strides = [1, 1]} : vector<128x512xf32> to vector<32x512xf32>
    %36 = arith.mulf %35, %24 : vector<32x512xf32>
    %cst_12 = arith.constant dense<0.000000e+00> : vector<512xf32>
    %37 = vector.multi_reduction <add>, %36, %cst_12 [0] : vector<32x512xf32> to vector<512xf32>
    %38 = vector.shape_cast %37 : vector<512xf32> to vector<1x512xf32>
    %39 = vector.extract_strided_slice %26 {offsets = [96, 0], sizes = [32, 512], strides = [1, 1]} : vector<128x512xf32> to vector<32x512xf32>
    %40 = arith.mulf %39, %24 : vector<32x512xf32>
    %cst_13 = arith.constant dense<0.000000e+00> : vector<512xf32>
    %41 = vector.multi_reduction <add>, %40, %cst_13 [0] : vector<32x512xf32> to vector<512xf32>
    %42 = vector.shape_cast %41 : vector<512xf32> to vector<1x512xf32>
    %43 = tpu.concatenate %30, %34, %38, %42 in 0 : vector<1x512xf32>, vector<1x512xf32>, vector<1x512xf32>, vector<1x512xf32> -> vector<4x512xf32>
    %cst_14 = arith.constant 0.000000e+00 : f32
    %44 = vector.broadcast %cst_14 : f32 to vector<4x512xf32>
    %45 = tpu.concatenate %43, %44 in 0 : vector<4x512xf32>, vector<4x512xf32> -> vector<8x512xf32>
    %c0_15 = arith.constant 0 : index
    %c0_16 = arith.constant 0 : index
    %46 = vector.load %arg4[%c0_15, %c0_16] : memref<8x512xf32, #tpu.memory_space<vmem>>, vector<8x512xf32>
    tpu.vector_store %arg4[%c0_15, %c0_16], %45 {strides = array<i32>} : memref<8x512xf32, #tpu.memory_space<vmem>>, vector<8x512xf32>,
    return
  }
  func.func @transform_0(%arg0: i32) -> (i32, i32) {
    %c0_i32 = arith.constant 0 : i32
    %c0_i32_0 = arith.constant 0 : i32
    return %c0_i32, %arg0 : i32, i32
  }
  func.func @transform_1(%arg0: i32) -> (i32, i32) {
    %c0_i32 = arith.constant 0 : i32
    %c0_i32_0 = arith.constant 0 : i32
    %c0_i32_1 = arith.constant 0 : i32
    return %c0_i32, %c0_i32_0 : i32, i32
  }
  func.func @transform_2(%arg0: i32) -> (i32, i32) {
    %c0_i32 = arith.constant 0 : i32
    %c0_i32_0 = arith.constant 0 : i32
    %c0_i32_1 = arith.constant 0 : i32
    return %c0_i32, %c0_i32_0 : i32, i32
  }
  func.func @transform_3(%arg0: i32) -> (i32, i32) {
    %c0_i32 = arith.constant 0 : i32
    %c0_i32_0 = arith.constant 0 : i32
    return %c0_i32, %arg0 : i32, i32
  }
}

</mosaic_0001>

<llo_original>
// kernel: tpu_custom_call.1
$region0: #{tpu_custom_call.1}
  #allocation0 [shape = 'u32[]', space=smem, size = 0x4, offset = 0x4, fixed_abs, tag = 'smem constant byte address 0x4 - core index']
  #allocation1 [shape = 'u32[144,128]{1,0:T(1,128)}', space=vmem, size = 0x12000, scoped, tag = 'internal scratch']
  %s0 = inlined_call_operand.vmem [shape: f32[2,512], index: 0, kind: input, shape index: {}]
  %s1 = inlined_call_operand.vmem [shape: f32[128,32], index: 1, kind: input, shape index: {}]
  %s2 = inlined_call_operand.vmem [shape: f32[32,2], index: 2, kind: input, shape index: {}]
  %s3 = inlined_call_operand.hbm [shape: f32[8,512], index: 3, kind: output, shape index: {}]
  %s4 = sld [smem:[#allocation0]]
  $region22: #{tpu_custom_call.1} parent=0
    _
  %s6 = ssub.s32 1, %s4
  %s7 = scalar_select 0, %s6, %s4
  $region1: #{tpu_custom_call.1} parent=0
    #allocation2 [shape = 'u8[16384]{0}', space=vmem, size = 0x4000, scoped, tag = 'output window, operand 0, single buffered']
    #allocation3 [shape = 's32[1]{0}', space=sflag, size = 0x4, scoped, tag = 'scoped memory for tpu_custom_call.1']
    %8 = vsyncpa [#allocation3], 0
    // Predicated region
    $region2: #{tpu_custom_call.1} parent=1 // pred_check
      _
    $region3: #{tpu_custom_call.1} parent=1 // pred_check_branch
      %10 = sbr.rel (0) target = $region5
    $region4: #{tpu_custom_call.1} parent=1 // pred_region
      _
    $region5: #{tpu_custom_call.1} parent=1 // pred_fallthru
      _
    // Predicated region
    $region6: #{tpu_custom_call.1} parent=1 // pred_check
      _
    $region7: #{tpu_custom_call.1} parent=1 // pred_check_branch
      %12 = sbr.rel (0) target = $region9
    $region8: #{tpu_custom_call.1} parent=1 // pred_region
      _
    $region9: #{tpu_custom_call.1} parent=1 // pred_fallthru
      _
    // Predicated region
    $region10: #{tpu_custom_call.1} parent=1 // pred_check
      _
    $region11: #{tpu_custom_call.1} parent=1 // pred_check_branch
      %14 = sbr.rel (0) target = $region13
    $region12: #{tpu_custom_call.1} parent=1 // pred_region
      _
    $region13: #{tpu_custom_call.1} parent=1 // pred_fallthru
      _
    %v15 = vld [vmem:[%s0] sm:$0xff]
    %v16 = vld [vmem:[%s2] sm:$0xff]
    %v17 = vld [vmem:[%s2 + $0x8] sm:$0xff]
    %v18 = vld [vmem:[%s2 + $0x10] sm:$0xff]
    %v19 = vld [vmem:[%s2 + $0x18] sm:$0xff]
    %21 = vset.pattern.permute.xlu0 0
    %22 = vperm.xlu0 %21, %v16
    %v23 = vpop.permute.xlu0 %22
    %26 = vset.pattern.permute.xlu0 0
    %27 = vperm.xlu0 %26, %v17
    %v28 = vpop.permute.xlu0 %27
    %31 = vset.pattern.permute.xlu0 0
    %32 = vperm.xlu0 %31, %v18
    %v33 = vpop.permute.xlu0 %32
    %36 = vset.pattern.permute.xlu0 0
    %37 = vperm.xlu0 %36, %v19
    %v38 = vpop.permute.xlu0 %37
    %v41 = vlaneseq
    %v42 = vshrl.u32 %v41, 7
    %v43 = vsub.s32 0, %v42
    %v44 = vrot.slane %v15, %v43
    %v45 = vlaneseq
    %v46 = vshrl.u32 %v45, 7
    %v47 = vsub.s32 2, %v46
    %v48 = vrot.slane %v15, %v47
    %v49 = vlaneseq
    %v50 = vshrl.u32 %v49, 7
    %v51 = vsub.s32 4, %v50
    %v52 = vrot.slane %v15, %v51
    %v53 = vlaneseq
    %v54 = vshrl.u32 %v53, 7
    %v55 = vsub.s32 6, %v54
    %v56 = vrot.slane %v15, %v55
    %v61 = vlaneseq
    %v62 = vshrl.u32 %v61, 7
    %v63 = vsub.s32 0, %v62
    %v64 = vrot.slane %v44, %v63
    %v65 = vlaneseq
    %v66 = vshrl.u32 %v65, 7
    %v67 = vsub.s32 0, %v66
    %v68 = vrot.slane %v48, %v67
    %v69 = vlaneseq
    %v70 = vshrl.u32 %v69, 7
    %v71 = vsub.s32 0, %v70
    %v72 = vrot.slane %v52, %v71
    %v73 = vlaneseq
    %v74 = vshrl.u32 %v73, 7
    %v75 = vsub.s32 0, %v74
    %v76 = vrot.slane %v56, %v75
    %v77 = vmul.f32 %v23, %v64
    %v78 = vmul.f32 %v23, %v68
    %v79 = vmul.f32 %v23, %v72
    %v80 = vmul.f32 %v23, %v76
    %v81 = vmul.f32 %v28, %v64
    %v82 = vmul.f32 %v28, %v68
    %v83 = vmul.f32 %v28, %v72
    %v84 = vmul.f32 %v28, %v76
    %v85 = vmul.f32 %v33, %v64
    %v86 = vmul.f32 %v33, %v68
    %v87 = vmul.f32 %v33, %v72
    %v88 = vmul.f32 %v33, %v76
    %v89 = vmul.f32 %v38, %v64
    %v90 = vmul.f32 %v38, %v68
    %v91 = vmul.f32 %v38, %v72
    %v92 = vmul.f32 %v38, %v76
    %93 = vset.pattern.permute.xlu0 1
    %94 = vperm.xlu0 %93, %v16
    %v95 = vpop.permute.xlu0 %94
    %97 = vset.pattern.permute.xlu0 1
    %98 = vperm.xlu0 %97, %v17
    %v99 = vpop.permute.xlu0 %98
    %101 = vset.pattern.permute.xlu0 1
    %102 = vperm.xlu0 %101, %v18
    %v103 = vpop.permute.xlu0 %102
    %105 = vset.pattern.permute.xlu0 1
    %106 = vperm.xlu0 %105, %v19
    %v107 = vpop.permute.xlu0 %106
    %v109 = vsub.f32 %v95, %v77
    %v110 = vsub.f32 %v95, %v78
    %v111 = vsub.f32 %v95, %v79
    %v112 = vsub.f32 %v95, %v80
    %v113 = vsub.f32 %v99, %v81
    %v114 = vsub.f32 %v99, %v82
    %v115 = vsub.f32 %v99, %v83
    %v116 = vsub.f32 %v99, %v84
    %v117 = vsub.f32 %v103, %v85
    %v118 = vsub.f32 %v103, %v86
    %v119 = vsub.f32 %v103, %v87
    %v120 = vsub.f32 %v103, %v88
    %v121 = vsub.f32 %v107, %v89
    %v122 = vsub.f32 %v107, %v90
    %v123 = vsub.f32 %v107, %v91
    %v124 = vsub.f32 %v107, %v92
    %v125 = vand.u32 2147483647, %v109
    %v126 = vand.u32 2147483647, %v110
    %v127 = vand.u32 2147483647, %v111
    %v128 = vand.u32 2147483647, %v112
    %v129 = vand.u32 2147483647, %v113
    %v130 = vand.u32 2147483647, %v114
    %v131 = vand.u32 2147483647, %v115
    %v132 = vand.u32 2147483647, %v116
    %v133 = vand.u32 2147483647, %v117
    %v134 = vand.u32 2147483647, %v118
    %v135 = vand.u32 2147483647, %v119
    %v136 = vand.u32 2147483647, %v120
    %v137 = vand.u32 2147483647, %v121
    %v138 = vand.u32 2147483647, %v122
    %v139 = vand.u32 2147483647, %v123
    %v140 = vand.u32 2147483647, %v124
    %v141 = vsub.f32 1.0, %v125
    %v142 = vsub.f32 1.0, %v126
    %v143 = vsub.f32 1.0, %v127
    %v144 = vsub.f32 1.0, %v128
    %v145 = vsub.f32 1.0, %v129
    %v146 = vsub.f32 1.0, %v130
    %v147 = vsub.f32 1.0, %v131
    %v148 = vsub.f32 1.0, %v132
    %v149 = vsub.f32 1.0, %v133
    %v150 = vsub.f32 1.0, %v134
    %v151 = vsub.f32 1.0, %v135
    %v152 = vsub.f32 1.0, %v136
    %v153 = vsub.f32 1.0, %v137
    %v154 = vsub.f32 1.0, %v138
    %v155 = vsub.f32 1.0, %v139
    %v156 = vsub.f32 1.0, %v140
    %v157 = vmax.f32 %v141, 0.0
    %v158 = vmax.f32 %v142, 0.0
    %v159 = vmax.f32 %v143, 0.0
    %v160 = vmax.f32 %v144, 0.0
    %v161 = vmax.f32 %v145, 0.0
    %v162 = vmax.f32 %v146, 0.0
    %v163 = vmax.f32 %v147, 0.0
    %v164 = vmax.f32 %v148, 0.0
    %v165 = vmax.f32 %v149, 0.0
    %v166 = vmax.f32 %v150, 0.0
    %v167 = vmax.f32 %v151, 0.0
    %v168 = vmax.f32 %v152, 0.0
    %v169 = vmax.f32 %v153, 0.0
    %v170 = vmax.f32 %v154, 0.0
    %v171 = vmax.f32 %v155, 0.0
    %v172 = vmax.f32 %v156, 0.0
    %v173 = vlaneseq
    %v174 = vshrl.u32 %v173, 7
    %v175 = vsub.s32 1, %v174
    %v176 = vrot.slane %v15, %v175
    %v177 = vlaneseq
    %v178 = vshrl.u32 %v177, 7
    %v179 = vsub.s32 3, %v178
    %v180 = vrot.slane %v15, %v179
    %v181 = vlaneseq
    %v182 = vshrl.u32 %v181, 7
    %v183 = vsub.s32 5, %v182
    %v184 = vrot.slane %v15, %v183
    %v185 = vlaneseq
    %v186 = vshrl.u32 %v185, 7
    %v187 = vsub.s32 7, %v186
    %v188 = vrot.slane %v15, %v187
    %v193 = vlaneseq
    %v194 = vshrl.u32 %v193, 7
    %v195 = vsub.s32 1, %v194
    %v196 = vrot.slane %v176, %v195
    %v197 = vlaneseq
    %v198 = vshrl.u32 %v197, 7
    %v199 = vsub.s32 1, %v198
    %v200 = vrot.slane %v180, %v199
    %v201 = vlaneseq
    %v202 = vshrl.u32 %v201, 7
    %v203 = vsub.s32 1, %v202
    %v204 = vrot.slane %v184, %v203
    %v205 = vlaneseq
    %v206 = vshrl.u32 %v205, 7
    %v207 = vsub.s32 1, %v206
    %v208 = vrot.slane %v188, %v207
    %v209 = vmul.f32 %v23, %v196
    %v210 = vmul.f32 %v23, %v200
    %v211 = vmul.f32 %v23, %v204
    %v212 = vmul.f32 %v23, %v208
    %v213 = vmul.f32 %v28, %v196
    %v214 = vmul.f32 %v28, %v200
    %v215 = vmul.f32 %v28, %v204
    %v216 = vmul.f32 %v28, %v208
    %v217 = vmul.f32 %v33, %v196
    %v218 = vmul.f32 %v33, %v200
    %v219 = vmul.f32 %v33, %v204
    %v220 = vmul.f32 %v33, %v208
    %v221 = vmul.f32 %v38, %v196
    %v222 = vmul.f32 %v38, %v200
    %v223 = vmul.f32 %v38, %v204
    %v224 = vmul.f32 %v38, %v208
    %v225 = vsub.f32 %v95, %v209
    %v226 = vsub.f32 %v95, %v210
    %v227 = vsub.f32 %v95, %v211
    %v228 = vsub.f32 %v95, %v212
    %v229 = vsub.f32 %v99, %v213
    %v230 = vsub.f32 %v99, %v214
    %v231 = vsub.f32 %v99, %v215
    %v232 = vsub.f32 %v99, %v216
    %v233 = vsub.f32 %v103, %v217
    %v234 = vsub.f32 %v103, %v218
    %v235 = vsub.f32 %v103, %v219
    %v236 = vsub.f32 %v103, %v220
    %v237 = vsub.f32 %v107, %v221
    %v238 = vsub.f32 %v107, %v222
    %v239 = vsub.f32 %v107, %v223
    %v240 = vsub.f32 %v107, %v224
    %v241 = vand.u32 2147483647, %v225
    %v242 = vand.u32 2147483647, %v226
    %v243 = vand.u32 2147483647, %v227
    %v244 = vand.u32 2147483647, %v228
    %v245 = vand.u32 2147483647, %v229
    %v246 = vand.u32 2147483647, %v230
    %v247 = vand.u32 2147483647, %v231
    %v248 = vand.u32 2147483647, %v232
    %v249 = vand.u32 2147483647, %v233
    %v250 = vand.u32 2147483647, %v234
    %v251 = vand.u32 2147483647, %v235
    %v252 = vand.u32 2147483647, %v236
    %v253 = vand.u32 2147483647, %v237
    %v254 = vand.u32 2147483647, %v238
    %v255 = vand.u32 2147483647, %v239
    %v256 = vand.u32 2147483647, %v240
    %v257 = vsub.f32 1.0, %v241
    %v258 = vsub.f32 1.0, %v242
    %v259 = vsub.f32 1.0, %v243
    %v260 = vsub.f32 1.0, %v244
    %v261 = vsub.f32 1.0, %v245
    %v262 = vsub.f32 1.0, %v246
    %v263 = vsub.f32 1.0, %v247
    %v264 = vsub.f32 1.0, %v248
    %v265 = vsub.f32 1.0, %v249
    %v266 = vsub.f32 1.0, %v250
    %v267 = vsub.f32 1.0, %v251
    %v268 = vsub.f32 1.0, %v252
    %v269 = vsub.f32 1.0, %v253
    %v270 = vsub.f32 1.0, %v254
    %v271 = vsub.f32 1.0, %v255
    %v272 = vsub.f32 1.0, %v256
    %v273 = vmax.f32 %v257, 0.0
    %v274 = vmax.f32 %v258, 0.0
    %v275 = vmax.f32 %v259, 0.0
    %v276 = vmax.f32 %v260, 0.0
    %v277 = vmax.f32 %v261, 0.0
    %v278 = vmax.f32 %v262, 0.0
    %v279 = vmax.f32 %v263, 0.0
    %v280 = vmax.f32 %v264, 0.0
    %v281 = vmax.f32 %v265, 0.0
    %v282 = vmax.f32 %v266, 0.0
    %v283 = vmax.f32 %v267, 0.0
    %v284 = vmax.f32 %v268, 0.0
    %v285 = vmax.f32 %v269, 0.0
    %v286 = vmax.f32 %v270, 0.0
    %v287 = vmax.f32 %v271, 0.0
    %v288 = vmax.f32 %v272, 0.0
    %v289 = vld [vmem:[%s1] sm:$0xff]
    %v290 = vld [vmem:[%s1 + $0x8] sm:$0xff]
    %v291 = vld [vmem:[%s1 + $0x10] sm:$0xff]
    %v292 = vld [vmem:[%s1 + $0x18] sm:$0xff]
    %v293 = vld [vmem:[%s1 + $0x20] sm:$0xff]
    %v294 = vld [vmem:[%s1 + $0x28] sm:$0xff]
    %v295 = vld [vmem:[%s1 + $0x30] sm:$0xff]
    %v296 = vld [vmem:[%s1 + $0x38] sm:$0xff]
    %v297 = vld [vmem:[%s1 + $0x40] sm:$0xff]
    %v298 = vld [vmem:[%s1 + $0x48] sm:$0xff]
    %v299 = vld [vmem:[%s1 + $0x50] sm:$0xff]
    %v300 = vld [vmem:[%s1 + $0x58] sm:$0xff]
    %v301 = vld [vmem:[%s1 + $0x60] sm:$0xff]
    %v302 = vld [vmem:[%s1 + $0x68] sm:$0xff]
    %v303 = vld [vmem:[%s1 + $0x70] sm:$0xff]
    %v304 = vld [vmem:[%s1 + $0x78] sm:$0xff]
    %vm305 = vcmask 261120
    %v307 = vsel %vm305, %v289, 0
    %v310 = vsel %vm305, %v290, 0
    %v313 = vsel %vm305, %v291, 0
    %v316 = vsel %vm305, %v292, 0
    %v319 = vsel %vm305, %v293, 0
    %v322 = vsel %vm305, %v294, 0
    %v325 = vsel %vm305, %v295, 0
    %v328 = vsel %vm305, %v296, 0
    %v331 = vsel %vm305, %v297, 0
    %v334 = vsel %vm305, %v298, 0
    %v337 = vsel %vm305, %v299, 0
    %v340 = vsel %vm305, %v300, 0
    %v343 = vsel %vm305, %v301, 0
    %v346 = vsel %vm305, %v302, 0
    %v349 = vsel %vm305, %v303, 0
    %v352 = vsel %vm305, %v304, 0
    %354 = vmatprep.subr.mxu0 0.0
    %355 = vmatpush1.msra.mxu0 0.0
    %356 = vmatprep.subr.mxu0 0.0
    %357 = vmatpush1.msra.mxu0 0.0
    %358 = vmatprep.subr.mxu0 0.0
    %359 = vmatpush1.msra.mxu0 0.0
    %360 = vmatprep.subr.mxu0 0.0
    %361 = vmatpush1.msra.mxu0 0.0
    %362 = vmatprep.subr.mxu0 0.0
    %363 = vmatpush1.msra.mxu0 0.0
    %364 = vmatprep.subr.mxu0 0.0
    %365 = vmatpush1.msra.mxu0 0.0
    %366 = vmatprep.subr.mxu0 0.0
    %367 = vmatpush1.msra.mxu0 0.0
    %368 = vmatprep.subr.mxu0 0.0
    %369 = vmatpush1.msra.mxu0 0.0
    %370 = vmatprep.subr.mxu0 0.0
    %371 = vmatpush1.msra.mxu0 0.0
    %372 = vmatprep.subr.mxu0 0.0
    %373 = vmatpush1.msra.mxu0 0.0
    %374 = vmatprep.subr.mxu0 0.0
    %375 = vmatpush1.msra.mxu0 0.0
    %376 = vmatprep.subr.mxu0 0.0
    %377 = vmatpush1.msra.mxu0 0.0
    %378 = vmatprep.subr.mxu0 %v170
    %379 = vmatpush1.msra.mxu0 %v169
    %380 = vmatprep.subr.mxu0 %v166
    %381 = vmatpush1.msra.mxu0 %v165
    %382 = vmatprep.subr.mxu0 %v162
    %383 = vmatpush1.msra.mxu0 %v161
    %384 = vmatprep.subr.mxu0 %v158
    %385 = vmatpush1.msra.mxu0 %v157
    %386 = vmatprep.subr.mxu0 0.0
    %387 = vmatpush2.msra.mxu0 0.0
    %388 = vmatprep.subr.mxu0 0.0
    %389 = vmatpush2.msra.mxu0 0.0
    %390 = vmatprep.subr.mxu0 0.0
    %391 = vmatpush2.msra.mxu0 0.0
    %392 = vmatprep.subr.mxu0 0.0
    %393 = vmatpush2.msra.mxu0 0.0
    %394 = vmatprep.subr.mxu0 0.0
    %395 = vmatpush2.msra.mxu0 0.0
    %396 = vmatprep.subr.mxu0 0.0
    %397 = vmatpush2.msra.mxu0 0.0
    %398 = vmatprep.subr.mxu0 0.0
    %399 = vmatpush2.msra.mxu0 0.0
    %400 = vmatprep.subr.mxu0 0.0
    %401 = vmatpush2.msra.mxu0 0.0
    %402 = vmatprep.subr.mxu0 0.0
    %403 = vmatpush2.msra.mxu0 0.0
    %404 = vmatprep.subr.mxu0 0.0
    %405 = vmatpush2.msra.mxu0 0.0
    %406 = vmatprep.subr.mxu0 0.0
    %407 = vmatpush2.msra.mxu0 0.0
    %408 = vmatprep.subr.mxu0 0.0
    %409 = vmatpush2.msra.mxu0 0.0
    %410 = vmatprep.subr.mxu0 0.0
    %411 = vmatpush2.msra.mxu0 0.0
    %412 = vmatprep.subr.mxu0 0.0
    %413 = vmatpush2.msra.mxu0 0.0
    %414 = vmatprep.subr.mxu0 0.0
    %415 = vmatpush2.msra.mxu0 0.0
    %416 = vmatprep.subr.mxu0 0.0
    %417 = vmatpush2.msra.mxu0 0.0
    %418 = vmatprep.mubr.f32.mxu0 0.0
    %419 = vmatmul.mubr.f32.gmra.mxu0 %v307
    %v420 = vpop.f32.mrf.mxu0
    %v421 = vadd.f32 0.0, %v420
    %v422 = vpop.f32.mrf.mxu0
    %v423 = vadd.f32 0.0, %v422
    %424 = vmatprep.mubr.f32.mxu0 0.0
    %425 = vmatmul.mubr.f32.gmra.mxu0 %v310
    %v426 = vpop.f32.mrf.mxu0
    %v427 = vadd.f32 0.0, %v426
    %v428 = vpop.f32.mrf.mxu0
    %v429 = vadd.f32 0.0, %v428
    %430 = vmatprep.mubr.f32.mxu0 0.0
    %431 = vmatmul.mubr.f32.gmra.mxu0 %v313
    %v432 = vpop.f32.mrf.mxu0
    %v433 = vadd.f32 0.0, %v432
    %v434 = vpop.f32.mrf.mxu0
    %v435 = vadd.f32 0.0, %v434
    %436 = vmatprep.mubr.f32.mxu0 0.0
    %437 = vmatmul.mubr.f32.gmra.mxu0 %v316
    %v438 = vpop.f32.mrf.mxu0
    %v439 = vadd.f32 0.0, %v438
    %v440 = vpop.f32.mrf.mxu0
    %v441 = vadd.f32 0.0, %v440
    %442 = vmatprep.mubr.f32.mxu0 0.0
    %443 = vmatmul.mubr.f32.gmra.mxu0 %v319
    %v444 = vpop.f32.mrf.mxu0
    %v445 = vadd.f32 0.0, %v444
    %v446 = vpop.f32.mrf.mxu0
    %v447 = vadd.f32 0.0, %v446
    %448 = vmatprep.mubr.f32.mxu0 0.0
    %449 = vmatmul.mubr.f32.gmra.mxu0 %v322
    %v450 = vpop.f32.mrf.mxu0
    %v451 = vadd.f32 0.0, %v450
    %v452 = vpop.f32.mrf.mxu0
    %v453 = vadd.f32 0.0, %v452
    %454 = vmatprep.mubr.f32.mxu0 0.0
    %455 = vmatmul.mubr.f32.gmra.mxu0 %v325
    %v456 = vpop.f32.mrf.mxu0
    %v457 = vadd.f32 0.0, %v456
    %v458 = vpop.f32.mrf.mxu0
    %v459 = vadd.f32 0.0, %v458
    %460 = vmatprep.mubr.f32.mxu0 0.0
    %461 = vmatmul.mubr.f32.gmra.mxu0 %v328
    %v462 = vpop.f32.mrf.mxu0
    %v463 = vadd.f32 0.0, %v462
    %v464 = vpop.f32.mrf.mxu0
    %v465 = vadd.f32 0.0, %v464
    %466 = vmatprep.mubr.f32.mxu0 0.0
    %467 = vmatmul.mubr.f32.gmra.mxu0 %v331
    %v468 = vpop.f32.mrf.mxu0
    %v469 = vadd.f32 0.0, %v468
    %v470 = vpop.f32.mrf.mxu0
    %v471 = vadd.f32 0.0, %v470
    %472 = vmatprep.mubr.f32.mxu0 0.0
    %473 = vmatmul.mubr.f32.gmra.mxu0 %v334
    %v474 = vpop.f32.mrf.mxu0
    %v475 = vadd.f32 0.0, %v474
    %v476 = vpop.f32.mrf.mxu0
    %v477 = vadd.f32 0.0, %v476
    %478 = vmatprep.mubr.f32.mxu0 0.0
    %479 = vmatmul.mubr.f32.gmra.mxu0 %v337
    %v480 = vpop.f32.mrf.mxu0
    %v481 = vadd.f32 0.0, %v480
    %v482 = vpop.f32.mrf.mxu0
    %v483 = vadd.f32 0.0, %v482
    %484 = vmatprep.mubr.f32.mxu0 0.0
    %485 = vmatmul.mubr.f32.gmra.mxu0 %v340
    %v486 = vpop.f32.mrf.mxu0
    %v487 = vadd.f32 0.0, %v486
    %v488 = vpop.f32.mrf.mxu0
    %v489 = vadd.f32 0.0, %v488
    %490 = vmatprep.mubr.f32.mxu0 0.0
    %491 = vmatmul.mubr.f32.gmra.mxu0 %v343
    %v492 = vpop.f32.mrf.mxu0
    %v493 = vadd.f32 0.0, %v492
    %v494 = vpop.f32.mrf.mxu0
    %v495 = vadd.f32 0.0, %v494
    %496 = vmatprep.mubr.f32.mxu0 0.0
    %497 = vmatmul.mubr.f32.gmra.mxu0 %v346
    %v498 = vpop.f32.mrf.mxu0
    %v499 = vadd.f32 0.0, %v498
    %v500 = vpop.f32.mrf.mxu0
    %v501 = vadd.f32 0.0, %v500
    %502 = vmatprep.mubr.f32.mxu0 0.0
    %503 = vmatmul.mubr.f32.gmra.mxu0 %v349
    %v504 = vpop.f32.mrf.mxu0
    %v505 = vadd.f32 0.0, %v504
    %v506 = vpop.f32.mrf.mxu0
    %v507 = vadd.f32 0.0, %v506
    %508 = vmatprep.mubr.f32.mxu0 0.0
    %509 = vmatmul.mubr.f32.gmra.mxu0 %v352
    %v510 = vpop.f32.mrf.mxu0
    %v511 = vadd.f32 0.0, %v510
    %v512 = vpop.f32.mrf.mxu0
    %v513 = vadd.f32 0.0, %v512
    %514 = vdwg.mxu0
    %515 = vmatprep.subr.mxu0 0.0
    %516 = vmatpush1.msra.mxu0 0.0
    %517 = vmatprep.subr.mxu0 0.0
    %518 = vmatpush1.msra.mxu0 0.0
    %519 = vmatprep.subr.mxu0 0.0
    %520 = vmatpush1.msra.mxu0 0.0
    %521 = vmatprep.subr.mxu0 0.0
    %522 = vmatpush1.msra.mxu0 0.0
    %523 = vmatprep.subr.mxu0 0.0
    %524 = vmatpush1.msra.mxu0 0.0
    %525 = vmatprep.subr.mxu0 0.0
    %526 = vmatpush1.msra.mxu0 0.0
    %527 = vmatprep.subr.mxu0 0.0
    %528 = vmatpush1.msra.mxu0 0.0
    %529 = vmatprep.subr.mxu0 0.0
    %530 = vmatpush1.msra.mxu0 0.0
    %531 = vmatprep.subr.mxu0 0.0
    %532 = vmatpush1.msra.mxu0 0.0
    %533 = vmatprep.subr.mxu0 0.0
    %534 = vmatpush1.msra.mxu0 0.0
    %535 = vmatprep.subr.mxu0 0.0
    %536 = vmatpush1.msra.mxu0 0.0
    %537 = vmatprep.subr.mxu0 0.0
    %538 = vmatpush1.msra.mxu0 0.0
    %539 = vmatprep.subr.mxu0 %v172
    %540 = vmatpush1.msra.mxu0 %v171
    %541 = vmatprep.subr.mxu0 %v168
    %542 = vmatpush1.msra.mxu0 %v167
    %543 = vmatprep.subr.mxu0 %v164
    %544 = vmatpush1.msra.mxu0 %v163
    %545 = vmatprep.subr.mxu0 %v160
    %546 = vmatpush1.msra.mxu0 %v159
    %547 = vmatprep.subr.mxu0 0.0
    %548 = vmatpush2.msra.mxu0 0.0
    %549 = vmatprep.subr.mxu0 0.0
    %550 = vmatpush2.msra.mxu0 0.0
    %551 = vmatprep.subr.mxu0 0.0
    %552 = vmatpush2.msra.mxu0 0.0
    %553 = vmatprep.subr.mxu0 0.0
    %554 = vmatpush2.msra.mxu0 0.0
    %555 = vmatprep.subr.mxu0 0.0
    %556 = vmatpush2.msra.mxu0 0.0
    %557 = vmatprep.subr.mxu0 0.0
    %558 = vmatpush2.msra.mxu0 0.0
    %559 = vmatprep.subr.mxu0 0.0
    %560 = vmatpush2.msra.mxu0 0.0
    %561 = vmatprep.subr.mxu0 0.0
    %562 = vmatpush2.msra.mxu0 0.0
    %563 = vmatprep.subr.mxu0 0.0
    %564 = vmatpush2.msra.mxu0 0.0
    %565 = vmatprep.subr.mxu0 0.0
    %566 = vmatpush2.msra.mxu0 0.0
    %567 = vmatprep.subr.mxu0 0.0
    %568 = vmatpush2.msra.mxu0 0.0
    %569 = vmatprep.subr.mxu0 0.0
    %570 = vmatpush2.msra.mxu0 0.0
    %571 = vmatprep.subr.mxu0 0.0
    %572 = vmatpush2.msra.mxu0 0.0
    %573 = vmatprep.subr.mxu0 0.0
    %574 = vmatpush2.msra.mxu0 0.0
    %575 = vmatprep.subr.mxu0 0.0
    %576 = vmatpush2.msra.mxu0 0.0
    %577 = vmatprep.subr.mxu0 0.0
    %578 = vmatpush2.msra.mxu0 0.0
    %579 = vmatprep.mubr.f32.mxu0 0.0
    %580 = vmatmul.mubr.f32.gmra.mxu0 %v307
    %v581 = vpop.f32.mrf.mxu0
    %v582 = vadd.f32 0.0, %v581
    %v583 = vpop.f32.mrf.mxu0
    %v584 = vadd.f32 0.0, %v583
    %585 = vmatprep.mubr.f32.mxu0 0.0
    %586 = vmatmul.mubr.f32.gmra.mxu0 %v310
    %v587 = vpop.f32.mrf.mxu0
    %v588 = vadd.f32 0.0, %v587
    %v589 = vpop.f32.mrf.mxu0
    %v590 = vadd.f32 0.0, %v589
    %591 = vmatprep.mubr.f32.mxu0 0.0
    %592 = vmatmul.mubr.f32.gmra.mxu0 %v313
    %v593 = vpop.f32.mrf.mxu0
    %v594 = vadd.f32 0.0, %v593
    %v595 = vpop.f32.mrf.mxu0
    %v596 = vadd.f32 0.0, %v595
    %597 = vmatprep.mubr.f32.mxu0 0.0
    %598 = vmatmul.mubr.f32.gmra.mxu0 %v316
    %v599 = vpop.f32.mrf.mxu0
    %v600 = vadd.f32 0.0, %v599
    %v601 = vpop.f32.mrf.mxu0
    %v602 = vadd.f32 0.0, %v601
    %603 = vmatprep.mubr.f32.mxu0 0.0
    %604 = vmatmul.mubr.f32.gmra.mxu0 %v319
    %v605 = vpop.f32.mrf.mxu0
    %v606 = vadd.f32 0.0, %v605
    %v607 = vpop.f32.mrf.mxu0
    %v608 = vadd.f32 0.0, %v607
    %609 = vmatprep.mubr.f32.mxu0 0.0
    %610 = vmatmul.mubr.f32.gmra.mxu0 %v322
    %v611 = vpop.f32.mrf.mxu0
    %v612 = vadd.f32 0.0, %v611
    %v613 = vpop.f32.mrf.mxu0
    %v614 = vadd.f32 0.0, %v613
    %615 = vmatprep.mubr.f32.mxu0 0.0
    %616 = vmatmul.mubr.f32.gmra.mxu0 %v325
    %v617 = vpop.f32.mrf.mxu0
    %v618 = vadd.f32 0.0, %v617
    %v619 = vpop.f32.mrf.mxu0
    %v620 = vadd.f32 0.0, %v619
    %621 = vmatprep.mubr.f32.mxu0 0.0
    %622 = vmatmul.mubr.f32.gmra.mxu0 %v328
    %v623 = vpop.f32.mrf.mxu0
    %v624 = vadd.f32 0.0, %v623
    %v625 = vpop.f32.mrf.mxu0
    %v626 = vadd.f32 0.0, %v625
    %627 = vmatprep.mubr.f32.mxu0 0.0
    %628 = vmatmul.mubr.f32.gmra.mxu0 %v331
    %v629 = vpop.f32.mrf.mxu0
    %v630 = vadd.f32 0.0, %v629
    %v631 = vpop.f32.mrf.mxu0
    %v632 = vadd.f32 0.0, %v631
    %633 = vmatprep.mubr.f32.mxu0 0.0
    %634 = vmatmul.mubr.f32.gmra.mxu0 %v334
    %v635 = vpop.f32.mrf.mxu0
    %v636 = vadd.f32 0.0, %v635
    %v637 = vpop.f32.mrf.mxu0
    %v638 = vadd.f32 0.0, %v637
    %639 = vmatprep.mubr.f32.mxu0 0.0
    %640 = vmatmul.mubr.f32.gmra.mxu0 %v337
    %v641 = vpop.f32.mrf.mxu0
    %v642 = vadd.f32 0.0, %v641
    %v643 = vpop.f32.mrf.mxu0
    %v644 = vadd.f32 0.0, %v643
    %645 = vmatprep.mubr.f32.mxu0 0.0
    %646 = vmatmul.mubr.f32.gmra.mxu0 %v340
    %v647 = vpop.f32.mrf.mxu0
    %v648 = vadd.f32 0.0, %v647
    %v649 = vpop.f32.mrf.mxu0
    %v650 = vadd.f32 0.0, %v649
    %651 = vmatprep.mubr.f32.mxu0 0.0
    %652 = vmatmul.mubr.f32.gmra.mxu0 %v343
    %v653 = vpop.f32.mrf.mxu0
    %v654 = vadd.f32 0.0, %v653
    %v655 = vpop.f32.mrf.mxu0
    %v656 = vadd.f32 0.0, %v655
    %657 = vmatprep.mubr.f32.mxu0 0.0
    %658 = vmatmul.mubr.f32.gmra.mxu0 %v346
    %v659 = vpop.f32.mrf.mxu0
    %v660 = vadd.f32 0.0, %v659
    %v661 = vpop.f32.mrf.mxu0
    %v662 = vadd.f32 0.0, %v661
    %663 = vmatprep.mubr.f32.mxu0 0.0
    %664 = vmatmul.mubr.f32.gmra.mxu0 %v349
    %v665 = vpop.f32.mrf.mxu0
    %v666 = vadd.f32 0.0, %v665
    %v667 = vpop.f32.mrf.mxu0
    %v668 = vadd.f32 0.0, %v667
    %669 = vmatprep.mubr.f32.mxu0 0.0
    %670 = vmatmul.mubr.f32.gmra.mxu0 %v352
    %v671 = vpop.f32.mrf.mxu0
    %v672 = vadd.f32 0.0, %v671
    %v673 = vpop.f32.mrf.mxu0
    %v674 = vadd.f32 0.0, %v673
    %675 = vdwg.mxu0
    %v676 = vmul.f32 %v421, %v273
    %v677 = vmul.f32 %v423, %v274
    %v678 = vmul.f32 %v582, %v275
    %v679 = vmul.f32 %v584, %v276
    %v680 = vmul.f32 %v427, %v277
    %v681 = vmul.f32 %v429, %v278
    %v682 = vmul.f32 %v588, %v279
    %v683 = vmul.f32 %v590, %v280
    %v684 = vmul.f32 %v433, %v281
    %v685 = vmul.f32 %v435, %v282
    %v686 = vmul.f32 %v594, %v283
    %v687 = vmul.f32 %v596, %v284
    %v688 = vmul.f32 %v439, %v285
    %v689 = vmul.f32 %v441, %v286
    %v690 = vmul.f32 %v600, %v287
    %v691 = vmul.f32 %v602, %v288
    %v692 = vadd.f32 %v676, %v680
    %v693 = vadd.f32 %v692, %v684
    %v694 = vadd.f32 %v693, %v688
    %v695 = vrot.slane %v694, 4
    %v696 = vadd.f32 %v694, %v695
    %v697 = vrot.slane %v696, 2
    %v698 = vadd.f32 %v696, %v697
    %v699 = vrot.slane %v698, 1
    %v700 = vadd.f32 %v698, %v699
    %v701 = vadd.f32 %v677, %v681
    %v702 = vadd.f32 %v701, %v685
    %v703 = vadd.f32 %v702, %v689
    %v704 = vrot.slane %v703, 4
    %v705 = vadd.f32 %v703, %v704
    %v706 = vrot.slane %v705, 2
    %v707 = vadd.f32 %v705, %v706
    %v708 = vrot.slane %v707, 1
    %v709 = vadd.f32 %v707, %v708
    %v710 = vadd.f32 %v678, %v682
    %v711 = vadd.f32 %v710, %v686
    %v712 = vadd.f32 %v711, %v690
    %v713 = vrot.slane %v712, 4
    %v714 = vadd.f32 %v712, %v713
    %v715 = vrot.slane %v714, 2
    %v716 = vadd.f32 %v714, %v715
    %v717 = vrot.slane %v716, 1
    %v718 = vadd.f32 %v716, %v717
    %v719 = vadd.f32 %v679, %v683
    %v720 = vadd.f32 %v719, %v687
    %v721 = vadd.f32 %v720, %v691
    %v722 = vrot.slane %v721, 4
    %v723 = vadd.f32 %v721, %v722
    %v724 = vrot.slane %v723, 2
    %v725 = vadd.f32 %v723, %v724
    %v726 = vrot.slane %v725, 1
    %v727 = vadd.f32 %v725, %v726
    %v728 = vmul.f32 %v445, %v273
    %v729 = vmul.f32 %v447, %v274
    %v730 = vmul.f32 %v606, %v275
    %v731 = vmul.f32 %v608, %v276
    %v732 = vmul.f32 %v451, %v277
    %v733 = vmul.f32 %v453, %v278
    %v734 = vmul.f32 %v612, %v279
    %v735 = vmul.f32 %v614, %v280
    %v736 = vmul.f32 %v457, %v281
    %v737 = vmul.f32 %v459, %v282
    %v738 = vmul.f32 %v618, %v283
    %v739 = vmul.f32 %v620, %v284
    %v740 = vmul.f32 %v463, %v285
    %v741 = vmul.f32 %v465, %v286
    %v742 = vmul.f32 %v624, %v287
    %v743 = vmul.f32 %v626, %v288
    %v744 = vadd.f32 %v728, %v732
    %v745 = vadd.f32 %v744, %v736
    %v746 = vadd.f32 %v745, %v740
    %v747 = vrot.slane %v746, 4
    %v748 = vadd.f32 %v746, %v747
    %v749 = vrot.slane %v748, 2
    %v750 = vadd.f32 %v748, %v749
    %v751 = vrot.slane %v750, 1
    %v752 = vadd.f32 %v750, %v751
    %v753 = vadd.f32 %v729, %v733
    %v754 = vadd.f32 %v753, %v737
    %v755 = vadd.f32 %v754, %v741
    %v756 = vrot.slane %v755, 4
    %v757 = vadd.f32 %v755, %v756
    %v758 = vrot.slane %v757, 2
    %v759 = vadd.f32 %v757, %v758
    %v760 = vrot.slane %v759, 1
    %v761 = vadd.f32 %v759, %v760
    %v762 = vadd.f32 %v730, %v734
    %v763 = vadd.f32 %v762, %v738
    %v764 = vadd.f32 %v763, %v742
    %v765 = vrot.slane %v764, 4
    %v766 = vadd.f32 %v764, %v765
    %v767 = vrot.slane %v766, 2
    %v768 = vadd.f32 %v766, %v767
    %v769 = vrot.slane %v768, 1
    %v770 = vadd.f32 %v768, %v769
    %v771 = vadd.f32 %v731, %v735
    %v772 = vadd.f32 %v771, %v739
    %v773 = vadd.f32 %v772, %v743
    %v774 = vrot.slane %v773, 4
    %v775 = vadd.f32 %v773, %v774
    %v776 = vrot.slane %v775, 2
    %v777 = vadd.f32 %v775, %v776
    %v778 = vrot.slane %v777, 1
    %v779 = vadd.f32 %v777, %v778
    %v780 = vmul.f32 %v469, %v273
    %v781 = vmul.f32 %v471, %v274
    %v782 = vmul.f32 %v630, %v275
    %v783 = vmul.f32 %v632, %v276
    %v784 = vmul.f32 %v475, %v277
    %v785 = vmul.f32 %v477, %v278
    %v786 = vmul.f32 %v636, %v279
    %v787 = vmul.f32 %v638, %v280
    %v788 = vmul.f32 %v481, %v281
    %v789 = vmul.f32 %v483, %v282
    %v790 = vmul.f32 %v642, %v283
    %v791 = vmul.f32 %v644, %v284
    %v792 = vmul.f32 %v487, %v285
    %v793 = vmul.f32 %v489, %v286
    %v794 = vmul.f32 %v648, %v287
    %v795 = vmul.f32 %v650, %v288
    %v796 = vadd.f32 %v780, %v784
    %v797 = vadd.f32 %v796, %v788
    %v798 = vadd.f32 %v797, %v792
    %v799 = vrot.slane %v798, 4
    %v800 = vadd.f32 %v798, %v799
    %v801 = vrot.slane %v800, 2
    %v802 = vadd.f32 %v800, %v801
    %v803 = vrot.slane %v802, 1
    %v804 = vadd.f32 %v802, %v803
    %v805 = vadd.f32 %v781, %v785
    %v806 = vadd.f32 %v805, %v789
    %v807 = vadd.f32 %v806, %v793
    %v808 = vrot.slane %v807, 4
    %v809 = vadd.f32 %v807, %v808
    %v810 = vrot.slane %v809, 2
    %v811 = vadd.f32 %v809, %v810
    %v812 = vrot.slane %v811, 1
    %v813 = vadd.f32 %v811, %v812
    %v814 = vadd.f32 %v782, %v786
    %v815 = vadd.f32 %v814, %v790
    %v816 = vadd.f32 %v815, %v794
    %v817 = vrot.slane %v816, 4
    %v818 = vadd.f32 %v816, %v817
    %v819 = vrot.slane %v818, 2
    %v820 = vadd.f32 %v818, %v819
    %v821 = vrot.slane %v820, 1
    %v822 = vadd.f32 %v820, %v821
    %v823 = vadd.f32 %v783, %v787
    %v824 = vadd.f32 %v823, %v791
    %v825 = vadd.f32 %v824, %v795
    %v826 = vrot.slane %v825, 4
    %v827 = vadd.f32 %v825, %v826
    %v828 = vrot.slane %v827, 2
    %v829 = vadd.f32 %v827, %v828
    %v830 = vrot.slane %v829, 1
    %v831 = vadd.f32 %v829, %v830
    %v832 = vmul.f32 %v493, %v273
    %v833 = vmul.f32 %v495, %v274
    %v834 = vmul.f32 %v654, %v275
    %v835 = vmul.f32 %v656, %v276
    %v836 = vmul.f32 %v499, %v277
    %v837 = vmul.f32 %v501, %v278
    %v838 = vmul.f32 %v660, %v279
    %v839 = vmul.f32 %v662, %v280
    %v840 = vmul.f32 %v505, %v281
    %v841 = vmul.f32 %v507, %v282
    %v842 = vmul.f32 %v666, %v283
    %v843 = vmul.f32 %v668, %v284
    %v844 = vmul.f32 %v511, %v285
    %v845 = vmul.f32 %v513, %v286
    %v846 = vmul.f32 %v672, %v287
    %v847 = vmul.f32 %v674, %v288
    %v848 = vadd.f32 %v832, %v836
    %v849 = vadd.f32 %v848, %v840
    %v850 = vadd.f32 %v849, %v844
    %v851 = vrot.slane %v850, 4
    %v852 = vadd.f32 %v850, %v851
    %v853 = vrot.slane %v852, 2
    %v854 = vadd.f32 %v852, %v853
    %v855 = vrot.slane %v854, 1
    %v856 = vadd.f32 %v854, %v855
    %v857 = vadd.f32 %v833, %v837
    %v858 = vadd.f32 %v857, %v841
    %v859 = vadd.f32 %v858, %v845
    %v860 = vrot.slane %v859, 4
    %v861 = vadd.f32 %v859, %v860
    %v862 = vrot.slane %v861, 2
    %v863 = vadd.f32 %v861, %v862
    %v864 = vrot.slane %v863, 1
    %v865 = vadd.f32 %v863, %v864
    %v866 = vadd.f32 %v834, %v838
    %v867 = vadd.f32 %v866, %v842
    %v868 = vadd.f32 %v867, %v846
    %v869 = vrot.slane %v868, 4
    %v870 = vadd.f32 %v868, %v869
    %v871 = vrot.slane %v870, 2
    %v872 = vadd.f32 %v870, %v871
    %v873 = vrot.slane %v872, 1
    %v874 = vadd.f32 %v872, %v873
    %v875 = vadd.f32 %v835, %v839
    %v876 = vadd.f32 %v875, %v843
    %v877 = vadd.f32 %v876, %v847
    %v878 = vrot.slane %v877, 4
    %v879 = vadd.f32 %v877, %v878
    %v880 = vrot.slane %v879, 2
    %v881 = vadd.f32 %v879, %v880
    %v882 = vrot.slane %v881, 1
    %v883 = vadd.f32 %v881, %v882
    %vm884 = vcmask 1040384
    %v885 = vsel %vm884, %v700, %v752
    %v886 = vsel %vm884, %v709, %v761
    %v887 = vsel %vm884, %v718, %v770
    %v888 = vsel %vm884, %v727, %v779
    %vm889 = vcmask 1041408
    %v890 = vsel %vm889, %v885, %v804
    %v891 = vsel %vm889, %v886, %v813
    %v892 = vsel %vm889, %v887, %v822
    %v893 = vsel %vm889, %v888, %v831
    %vm894 = vcmask 1042432
    %v895 = vsel %vm894, %v890, %v856
    %v896 = vsel %vm894, %v891, %v865
    %v897 = vsel %vm894, %v892, %v874
    %v898 = vsel %vm894, %v893, %v883
    %vm899 = vcmask 1043456
    %v900 = vsel %vm899, %v895, 0.0
    %v901 = vsel %vm899, %v896, 0.0
    %v902 = vsel %vm899, %v897, 0.0
    %v903 = vsel %vm899, %v898, 0.0
    %904 = vst [vmem:[#allocation2] sm:$0xff] %v900
    %905 = vst [vmem:[#allocation2 + $0x8] sm:$0xff] %v901
    %906 = vst [vmem:[#allocation2 + $0x10] sm:$0xff] %v902
    %907 = vst [vmem:[#allocation2 + $0x18] sm:$0xff] %v903
    // Predicated region
    $region14: #{tpu_custom_call.1} parent=1 // pred_check
      _
    $region15: #{tpu_custom_call.1} parent=1 // pred_check_branch
      %909 = sbr.rel (0) target = $region17
    $region16: #{tpu_custom_call.1} parent=1 // pred_region
      %s911 = ssub.s32 512, 512
      %912 = vsyncadd [#allocation3], %s911
      %s914 = sshll.u32 [#allocation2], 4
      %s915 = int_to_ptr.vmem [resolvable:$true] %s914
      %917 = dma.vmem_to_hbm [thread:$0]  %s915, 512, %s3, [#allocation3]
    $region17: #{tpu_custom_call.1} parent=1 // pred_fallthru
      _
    // Predicated region
    $region18: #{tpu_custom_call.1} parent=1 // pred_check
      _
    $region19: #{tpu_custom_call.1} parent=1 // pred_check_branch
      %919 = sbr.rel (0) target = $region21
    $region20: #{tpu_custom_call.1} parent=1 // pred_region
      %920 = dma.done [#allocation3], 512
    $region21: #{tpu_custom_call.1} parent=1 // pred_fallthru
      _
    %921 = vsyncpa [#allocation3], 1

// kernel: tpu_custom_call.1
$region0: #{tpu_custom_call.1}
  #allocation0 [shape = 'u32[]', space=smem, size = 0x4, offset = 0x4, fixed_abs, tag = 'smem constant byte address 0x4 - core index']
  #allocation1 [shape = 'u32[144,128]{1,0:T(1,128)}', space=vmem, size = 0x12000, scoped, tag = 'internal scratch']
  %s0 = inlined_call_operand.vmem [shape: f32[2,512], index: 0, kind: input, shape index: {}]
  %s1 = inlined_call_operand.vmem [shape: f32[128,32], index: 1, kind: input, shape index: {}]
  %s2 = inlined_call_operand.vmem [shape: f32[32,2], index: 2, kind: input, shape index: {}]
  %s3 = inlined_call_operand.hbm [shape: f32[8,512], index: 3, kind: output, shape index: {}]
  %s4 = sld [smem:[#allocation0]]
  $region22: #{tpu_custom_call.1} parent=0
    _
  %s6 = ssub.s32 1, %s4
  %s7 = scalar_select 0, %s6, %s4
  $region1: #{tpu_custom_call.1} parent=0
    #allocation2 [shape = 'u8[16384]{0}', space=vmem, size = 0x4000, scoped, tag = 'output window, operand 0, single buffered']
    #allocation3 [shape = 's32[1]{0}', space=sflag, size = 0x4, scoped, tag = 'scoped memory for tpu_custom_call.1']
    %8 = vsyncpa [#allocation3], 0
    // Predicated region
    $region2: #{tpu_custom_call.1} parent=1 // pred_check
      _
    $region3: #{tpu_custom_call.1} parent=1 // pred_check_branch
      %10 = sbr.rel (0) target = $region5
    $region4: #{tpu_custom_call.1} parent=1 // pred_region
      _
    $region5: #{tpu_custom_call.1} parent=1 // pred_fallthru
      _
    // Predicated region
    $region6: #{tpu_custom_call.1} parent=1 // pred_check
      _
    $region7: #{tpu_custom_call.1} parent=1 // pred_check_branch
      %12 = sbr.rel (0) target = $region9
    $region8: #{tpu_custom_call.1} parent=1 // pred_region
      _
    $region9: #{tpu_custom_call.1} parent=1 // pred_fallthru
      _
    // Predicated region
    $region10: #{tpu_custom_call.1} parent=1 // pred_check
      _
    $region11: #{tpu_custom_call.1} parent=1 // pred_check_branch
      %14 = sbr.rel (0) target = $region13
    $region12: #{tpu_custom_call.1} parent=1 // pred_region
      _
    $region13: #{tpu_custom_call.1} parent=1 // pred_fallthru
      _
    %v15 = vld [vmem:[%s0] sm:$0xff]
    %v16 = vld [vmem:[%s2] sm:$0xff]
    %v17 = vld [vmem:[%s2 + $0x8] sm:$0xff]
    %v18 = vld [vmem:[%s2 + $0x10] sm:$0xff]
    %v19 = vld [vmem:[%s2 + $0x18] sm:$0xff]
    %21 = vset.pattern.permute.xlu0 0
    %22 = vperm.xlu0 %21, %v16
    %v23 = vpop.permute.xlu0 %22
    %26 = vset.pattern.permute.xlu0 0
    %27 = vperm.xlu0 %26, %v17
    %v28 = vpop.permute.xlu0 %27
    %31 = vset.pattern.permute.xlu0 0
    %32 = vperm.xlu0 %31, %v18
    %v33 = vpop.permute.xlu0 %32
    %36 = vset.pattern.permute.xlu0 0
    %37 = vperm.xlu0 %36, %v19
    %v38 = vpop.permute.xlu0 %37
    %v41 = vlaneseq
    %v42 = vshrl.u32 %v41, 7
    %v43 = vsub.s32 0, %v42
    %v44 = vrot.slane %v15, %v43
    %v45 = vlaneseq
    %v46 = vshrl.u32 %v45, 7
    %v47 = vsub.s32 2, %v46
    %v48 = vrot.slane %v15, %v47
    %v49 = vlaneseq
    %v50 = vshrl.u32 %v49, 7
    %v51 = vsub.s32 4, %v50
    %v52 = vrot.slane %v15, %v51
    %v53 = vlaneseq
    %v54 = vshrl.u32 %v53, 7
    %v55 = vsub.s32 6, %v54
    %v56 = vrot.slane %v15, %v55
    %v61 = vlaneseq
    %v62 = vshrl.u32 %v61, 7
    %v63 = vsub.s32 0, %v62
    %v64 = vrot.slane %v44, %v63
    %v65 = vlaneseq
    %v66 = vshrl.u32 %v65, 7
    %v67 = vsub.s32 0, %v66
    %v68 = vrot.slane %v48, %v67
    %v69 = vlaneseq
    %v70 = vshrl.u32 %v69, 7
    %v71 = vsub.s32 0, %v70
    %v72 = vrot.slane %v52, %v71
    %v73 = vlaneseq
    %v74 = vshrl.u32 %v73, 7
    %v75 = vsub.s32 0, %v74
    %v76 = vrot.slane %v56, %v75
    %v77 = vmul.f32 %v23, %v64
    %v78 = vmul.f32 %v23, %v68
    %v79 = vmul.f32 %v23, %v72
    %v80 = vmul.f32 %v23, %v76
    %v81 = vmul.f32 %v28, %v64
    %v82 = vmul.f32 %v28, %v68
    %v83 = vmul.f32 %v28, %v72
    %v84 = vmul.f32 %v28, %v76
    %v85 = vmul.f32 %v33, %v64
    %v86 = vmul.f32 %v33, %v68
    %v87 = vmul.f32 %v33, %v72
    %v88 = vmul.f32 %v33, %v76
    %v89 = vmul.f32 %v38, %v64
    %v90 = vmul.f32 %v38, %v68
    %v91 = vmul.f32 %v38, %v72
    %v92 = vmul.f32 %v38, %v76
    %93 = vset.pattern.permute.xlu0 1
    %94 = vperm.xlu0 %93, %v16
    %v95 = vpop.permute.xlu0 %94
    %97 = vset.pattern.permute.xlu0 1
    %98 = vperm.xlu0 %97, %v17
    %v99 = vpop.permute.xlu0 %98
    %101 = vset.pattern.permute.xlu0 1
    %102 = vperm.xlu0 %101, %v18
    %v103 = vpop.permute.xlu0 %102
    %105 = vset.pattern.permute.xlu0 1
    %106 = vperm.xlu0 %105, %v19
    %v107 = vpop.permute.xlu0 %106
    %v109 = vsub.f32 %v95, %v77
    %v110 = vsub.f32 %v95, %v78
    %v111 = vsub.f32 %v95, %v79
    %v112 = vsub.f32 %v95, %v80
    %v113 = vsub.f32 %v99, %v81
    %v114 = vsub.f32 %v99, %v82
    %v115 = vsub.f32 %v99, %v83
    %v116 = vsub.f32 %v99, %v84
    %v117 = vsub.f32 %v103, %v85
    %v118 = vsub.f32 %v103, %v86
    %v119 = vsub.f32 %v103, %v87
    %v120 = vsub.f32 %v103, %v88
    %v121 = vsub.f32 %v107, %v89
    %v122 = vsub.f32 %v107, %v90
    %v123 = vsub.f32 %v107, %v91
    %v124 = vsub.f32 %v107, %v92
    %v125 = vand.u32 2147483647, %v109
    %v126 = vand.u32 2147483647, %v110
    %v127 = vand.u32 2147483647, %v111
    %v128 = vand.u32 2147483647, %v112
    %v129 = vand.u32 2147483647, %v113
    %v130 = vand.u32 2147483647, %v114
    %v131 = vand.u32 2147483647, %v115
    %v132 = vand.u32 2147483647, %v116
    %v133 = vand.u32 2147483647, %v117
    %v134 = vand.u32 2147483647, %v118
    %v135 = vand.u32 2147483647, %v119
    %v136 = vand.u32 2147483647, %v120
    %v137 = vand.u32 2147483647, %v121
    %v138 = vand.u32 2147483647, %v122
    %v139 = vand.u32 2147483647, %v123
    %v140 = vand.u32 2147483647, %v124
    %v141 = vsub.f32 1.0, %v125
    %v142 = vsub.f32 1.0, %v126
    %v143 = vsub.f32 1.0, %v127
    %v144 = vsub.f32 1.0, %v128
    %v145 = vsub.f32 1.0, %v129
    %v146 = vsub.f32 1.0, %v130
    %v147 = vsub.f32 1.0, %v131
    %v148 = vsub.f32 1.0, %v132
    %v149 = vsub.f32 1.0, %v133
    %v150 = vsub.f32 1.0, %v134
    %v151 = vsub.f32 1.0, %v135
    %v152 = vsub.f32 1.0, %v136
    %v153 = vsub.f32 1.0, %v137
    %v154 = vsub.f32 1.0, %v138
    %v155 = vsub.f32 1.0, %v139
    %v156 = vsub.f32 1.0, %v140
    %v157 = vmax.f32 %v141, 0.0
    %v158 = vmax.f32 %v142, 0.0
    %v159 = vmax.f32 %v143, 0.0
    %v160 = vmax.f32 %v144, 0.0
    %v161 = vmax.f32 %v145, 0.0
    %v162 = vmax.f32 %v146, 0.0
    %v163 = vmax.f32 %v147, 0.0
    %v164 = vmax.f32 %v148, 0.0
    %v165 = vmax.f32 %v149, 0.0
    %v166 = vmax.f32 %v150, 0.0
    %v167 = vmax.f32 %v151, 0.0
    %v168 = vmax.f32 %v152, 0.0
    %v169 = vmax.f32 %v153, 0.0
    %v170 = vmax.f32 %v154, 0.0
    %v171 = vmax.f32 %v155, 0.0
    %v172 = vmax.f32 %v156, 0.0
    %v173 = vlaneseq
    %v174 = vshrl.u32 %v173, 7
    %v175 = vsub.s32 1, %v174
    %v176 = vrot.slane %v15, %v175
    %v177 = vlaneseq
    %v178 = vshrl.u32 %v177, 7
    %v179 = vsub.s32 3, %v178
    %v180 = vrot.slane %v15, %v179
    %v181 = vlaneseq
    %v182 = vshrl.u32 %v181, 7
    %v183 = vsub.s32 5, %v182
    %v184 = vrot.slane %v15, %v183
    %v185 = vlaneseq
    %v186 = vshrl.u32 %v185, 7
    %v187 = vsub.s32 7, %v186
    %v188 = vrot.slane %v15, %v187
    %v193 = vlaneseq
    %v194 = vshrl.u32 %v193, 7
    %v195 = vsub.s32 1, %v194
    %v196 = vrot.slane %v176, %v195
    %v197 = vlaneseq
    %v198 = vshrl.u32 %v197, 7
    %v199 = vsub.s32 1, %v198
    %v200 = vrot.slane %v180, %v199
    %v201 = vlaneseq
    %v202 = vshrl.u32 %v201, 7
    %v203 = vsub.s32 1, %v202
    %v204 = vrot.slane %v184, %v203
    %v205 = vlaneseq
    %v206 = vshrl.u32 %v205, 7
    %v207 = vsub.s32 1, %v206
    %v208 = vrot.slane %v188, %v207
    %v209 = vmul.f32 %v23, %v196
    %v210 = vmul.f32 %v23, %v200
    %v211 = vmul.f32 %v23, %v204
    %v212 = vmul.f32 %v23, %v208
    %v213 = vmul.f32 %v28, %v196
    %v214 = vmul.f32 %v28, %v200
    %v215 = vmul.f32 %v28, %v204
    %v216 = vmul.f32 %v28, %v208
    %v217 = vmul.f32 %v33, %v196
    %v218 = vmul.f32 %v33, %v200
    %v219 = vmul.f32 %v33, %v204
    %v220 = vmul.f32 %v33, %v208
    %v221 = vmul.f32 %v38, %v196
    %v222 = vmul.f32 %v38, %v200
    %v223 = vmul.f32 %v38, %v204
    %v224 = vmul.f32 %v38, %v208
    %v225 = vsub.f32 %v95, %v209
    %v226 = vsub.f32 %v95, %v210
    %v227 = vsub.f32 %v95, %v211
    %v228 = vsub.f32 %v95, %v212
    %v229 = vsub.f32 %v99, %v213
    %v230 = vsub.f32 %v99, %v214
    %v231 = vsub.f32 %v99, %v215
    %v232 = vsub.f32 %v99, %v216
    %v233 = vsub.f32 %v103, %v217
    %v234 = vsub.f32 %v103, %v218
    %v235 = vsub.f32 %v103, %v219
    %v236 = vsub.f32 %v103, %v220
    %v237 = vsub.f32 %v107, %v221
    %v238 = vsub.f32 %v107, %v222
    %v239 = vsub.f32 %v107, %v223
    %v240 = vsub.f32 %v107, %v224
    %v241 = vand.u32 2147483647, %v225
    %v242 = vand.u32 2147483647, %v226
    %v243 = vand.u32 2147483647, %v227
    %v244 = vand.u32 2147483647, %v228
    %v245 = vand.u32 2147483647, %v229
    %v246 = vand.u32 2147483647, %v230
    %v247 = vand.u32 2147483647, %v231
    %v248 = vand.u32 2147483647, %v232
    %v249 = vand.u32 2147483647, %v233
    %v250 = vand.u32 2147483647, %v234
    %v251 = vand.u32 2147483647, %v235
    %v252 = vand.u32 2147483647, %v236
    %v253 = vand.u32 2147483647, %v237
    %v254 = vand.u32 2147483647, %v238
    %v255 = vand.u32 2147483647, %v239
    %v256 = vand.u32 2147483647, %v240
    %v257 = vsub.f32 1.0, %v241
    %v258 = vsub.f32 1.0, %v242
    %v259 = vsub.f32 1.0, %v243
    %v260 = vsub.f32 1.0, %v244
    %v261 = vsub.f32 1.0, %v245
    %v262 = vsub.f32 1.0, %v246
    %v263 = vsub.f32 1.0, %v247
    %v264 = vsub.f32 1.0, %v248
    %v265 = vsub.f32 1.0, %v249
    %v266 = vsub.f32 1.0, %v250
    %v267 = vsub.f32 1.0, %v251
    %v268 = vsub.f32 1.0, %v252
    %v269 = vsub.f32 1.0, %v253
    %v270 = vsub.f32 1.0, %v254
    %v271 = vsub.f32 1.0, %v255
    %v272 = vsub.f32 1.0, %v256
    %v273 = vmax.f32 %v257, 0.0
    %v274 = vmax.f32 %v258, 0.0
    %v275 = vmax.f32 %v259, 0.0
    %v276 = vmax.f32 %v260, 0.0
    %v277 = vmax.f32 %v261, 0.0
    %v278 = vmax.f32 %v262, 0.0
    %v279 = vmax.f32 %v263, 0.0
    %v280 = vmax.f32 %v264, 0.0
    %v281 = vmax.f32 %v265, 0.0
    %v282 = vmax.f32 %v266, 0.0
    %v283 = vmax.f32 %v267, 0.0
    %v284 = vmax.f32 %v268, 0.0
    %v285 = vmax.f32 %v269, 0.0
    %v286 = vmax.f32 %v270, 0.0
    %v287 = vmax.f32 %v271, 0.0
    %v288 = vmax.f32 %v272, 0.0
    %v289 = vld [vmem:[%s1] sm:$0xff]
    %v290 = vld [vmem:[%s1 + $0x8] sm:$0xff]
    %v291 = vld [vmem:[%s1 + $0x10] sm:$0xff]
    %v292 = vld [vmem:[%s1 + $0x18] sm:$0xff]
    %v293 = vld [vmem:[%s1 + $0x20] sm:$0xff]
    %v294 = vld [vmem:[%s1 + $0x28] sm:$0xff]
    %v295 = vld [vmem:[%s1 + $0x30] sm:$0xff]
    %v296 = vld [vmem:[%s1 + $0x38] sm:$0xff]
    %v297 = vld [vmem:[%s1 + $0x40] sm:$0xff]
    %v298 = vld [vmem:[%s1 + $0x48] sm:$0xff]
    %v299 = vld [vmem:[%s1 + $0x50] sm:$0xff]
    %v300 = vld [vmem:[%s1 + $0x58] sm:$0xff]
    %v301 = vld [vmem:[%s1 + $0x60] sm:$0xff]
    %v302 = vld [vmem:[%s1 + $0x68] sm:$0xff]
    %v303 = vld [vmem:[%s1 + $0x70] sm:$0xff]
    %v304 = vld [vmem:[%s1 + $0x78] sm:$0xff]
    %vm305 = vcmask 261120
    %v307 = vsel %vm305, %v289, 0
    %v310 = vsel %vm305, %v290, 0
    %v313 = vsel %vm305, %v291, 0
    %v316 = vsel %vm305, %v292, 0
    %v319 = vsel %vm305, %v293, 0
    %v322 = vsel %vm305, %v294, 0
    %v325 = vsel %vm305, %v295, 0
    %v328 = vsel %vm305, %v296, 0
    %v331 = vsel %vm305, %v297, 0
    %v334 = vsel %vm305, %v298, 0
    %v337 = vsel %vm305, %v299, 0
    %v340 = vsel %vm305, %v300, 0
    %v343 = vsel %vm305, %v301, 0
    %v346 = vsel %vm305, %v302, 0
    %v349 = vsel %vm305, %v303, 0
    %v352 = vsel %vm305, %v304, 0
    %354 = vmatprep.subr.mxu0 0.0
    %355 = vmatpush1.msra.mxu0 0.0
    %356 = vmatprep.subr.mxu0 0.0
    %357 = vmatpush1.msra.mxu0 0.0
    %358 = vmatprep.subr.mxu0 0.0
    %359 = vmatpush1.msra.mxu0 0.0
    %360 = vmatprep.subr.mxu0 0.0
    %361 = vmatpush1.msra.mxu0 0.0
    %362 = vmatprep.subr.mxu0 0.0
    %363 = vmatpush1.msra.mxu0 0.0
    %364 = vmatprep.subr.mxu0 0.0
    %365 = vmatpush1.msra.mxu0 0.0
    %366 = vmatprep.subr.mxu0 0.0
    %367 = vmatpush1.msra.mxu0 0.0
    %368 = vmatprep.subr.mxu0 0.0
    %369 = vmatpush1.msra.mxu0 0.0
    %370 = vmatprep.subr.mxu0 0.0
    %371 = vmatpush1.msra.mxu0 0.0
    %372 = vmatprep.subr.mxu0 0.0
    %373 = vmatpush1.msra.mxu0 0.0
    %374 = vmatprep.subr.mxu0 0.0
    %375 = vmatpush1.msra.mxu0 0.0
    %376 = vmatprep.subr.mxu0 0.0
    %377 = vmatpush1.msra.mxu0 0.0
    %378 = vmatprep.subr.mxu0 %v170
    %379 = vmatpush1.msra.mxu0 %v169
    %380 = vmatprep.subr.mxu0 %v166
    %381 = vmatpush1.msra.mxu0 %v165
    %382 = vmatprep.subr.mxu0 %v162
    %383 = vmatpush1.msra.mxu0 %v161
    %384 = vmatprep.subr.mxu0 %v158
    %385 = vmatpush1.msra.mxu0 %v157
    %386 = vmatprep.subr.mxu0 0.0
    %387 = vmatpush2.msra.mxu0 0.0
    %388 = vmatprep.subr.mxu0 0.0
    %389 = vmatpush2.msra.mxu0 0.0
    %390 = vmatprep.subr.mxu0 0.0
    %391 = vmatpush2.msra.mxu0 0.0
    %392 = vmatprep.subr.mxu0 0.0
    %393 = vmatpush2.msra.mxu0 0.0
    %394 = vmatprep.subr.mxu0 0.0
    %395 = vmatpush2.msra.mxu0 0.0
    %396 = vmatprep.subr.mxu0 0.0
    %397 = vmatpush2.msra.mxu0 0.0
    %398 = vmatprep.subr.mxu0 0.0
    %399 = vmatpush2.msra.mxu0 0.0
    %400 = vmatprep.subr.mxu0 0.0
    %401 = vmatpush2.msra.mxu0 0.0
    %402 = vmatprep.subr.mxu0 0.0
    %403 = vmatpush2.msra.mxu0 0.0
    %404 = vmatprep.subr.mxu0 0.0
    %405 = vmatpush2.msra.mxu0 0.0
    %406 = vmatprep.subr.mxu0 0.0
    %407 = vmatpush2.msra.mxu0 0.0
    %408 = vmatprep.subr.mxu0 0.0
    %409 = vmatpush2.msra.mxu0 0.0
    %410 = vmatprep.subr.mxu0 0.0
    %411 = vmatpush2.msra.mxu0 0.0
    %412 = vmatprep.subr.mxu0 0.0
    %413 = vmatpush2.msra.mxu0 0.0
    %414 = vmatprep.subr.mxu0 0.0
    %415 = vmatpush2.msra.mxu0 0.0
    %416 = vmatprep.subr.mxu0 0.0
    %417 = vmatpush2.msra.mxu0 0.0
    %418 = vmatprep.mubr.f32.mxu0 0.0
    %419 = vmatmul.mubr.f32.gmra.mxu0 %v307
    %v420 = vpop.f32.mrf.mxu0
    %v421 = vadd.f32 0.0, %v420
    %v422 = vpop.f32.mrf.mxu0
    %v423 = vadd.f32 0.0, %v422
    %424 = vmatprep.mubr.f32.mxu0 0.0
    %425 = vmatmul.mubr.f32.gmra.mxu0 %v310
    %v426 = vpop.f32.mrf.mxu0
    %v427 = vadd.f32 0.0, %v426
    %v428 = vpop.f32.mrf.mxu0
    %v429 = vadd.f32 0.0, %v428
    %430 = vmatprep.mubr.f32.mxu0 0.0
    %431 = vmatmul.mubr.f32.gmra.mxu0 %v313
    %v432 = vpop.f32.mrf.mxu0
    %v433 = vadd.f32 0.0, %v432
    %v434 = vpop.f32.mrf.mxu0
    %v435 = vadd.f32 0.0, %v434
    %436 = vmatprep.mubr.f32.mxu0 0.0
    %437 = vmatmul.mubr.f32.gmra.mxu0 %v316
    %v438 = vpop.f32.mrf.mxu0
    %v439 = vadd.f32 0.0, %v438
    %v440 = vpop.f32.mrf.mxu0
    %v441 = vadd.f32 0.0, %v440
    %442 = vmatprep.mubr.f32.mxu0 0.0
    %443 = vmatmul.mubr.f32.gmra.mxu0 %v319
    %v444 = vpop.f32.mrf.mxu0
    %v445 = vadd.f32 0.0, %v444
    %v446 = vpop.f32.mrf.mxu0
    %v447 = vadd.f32 0.0, %v446
    %448 = vmatprep.mubr.f32.mxu0 0.0
    %449 = vmatmul.mubr.f32.gmra.mxu0 %v322
    %v450 = vpop.f32.mrf.mxu0
    %v451 = vadd.f32 0.0, %v450
    %v452 = vpop.f32.mrf.mxu0
    %v453 = vadd.f32 0.0, %v452
    %454 = vmatprep.mubr.f32.mxu0 0.0
    %455 = vmatmul.mubr.f32.gmra.mxu0 %v325
    %v456 = vpop.f32.mrf.mxu0
    %v457 = vadd.f32 0.0, %v456
    %v458 = vpop.f32.mrf.mxu0
    %v459 = vadd.f32 0.0, %v458
    %460 = vmatprep.mubr.f32.mxu0 0.0
    %461 = vmatmul.mubr.f32.gmra.mxu0 %v328
    %v462 = vpop.f32.mrf.mxu0
    %v463 = vadd.f32 0.0, %v462
    %v464 = vpop.f32.mrf.mxu0
    %v465 = vadd.f32 0.0, %v464
    %466 = vmatprep.mubr.f32.mxu0 0.0
    %467 = vmatmul.mubr.f32.gmra.mxu0 %v331
    %v468 = vpop.f32.mrf.mxu0
    %v469 = vadd.f32 0.0, %v468
    %v470 = vpop.f32.mrf.mxu0
    %v471 = vadd.f32 0.0, %v470
    %472 = vmatprep.mubr.f32.mxu0 0.0
    %473 = vmatmul.mubr.f32.gmra.mxu0 %v334
    %v474 = vpop.f32.mrf.mxu0
    %v475 = vadd.f32 0.0, %v474
    %v476 = vpop.f32.mrf.mxu0
    %v477 = vadd.f32 0.0, %v476
    %478 = vmatprep.mubr.f32.mxu0 0.0
    %479 = vmatmul.mubr.f32.gmra.mxu0 %v337
    %v480 = vpop.f32.mrf.mxu0
    %v481 = vadd.f32 0.0, %v480
    %v482 = vpop.f32.mrf.mxu0
    %v483 = vadd.f32 0.0, %v482
    %484 = vmatprep.mubr.f32.mxu0 0.0
    %485 = vmatmul.mubr.f32.gmra.mxu0 %v340
    %v486 = vpop.f32.mrf.mxu0
    %v487 = vadd.f32 0.0, %v486
    %v488 = vpop.f32.mrf.mxu0
    %v489 = vadd.f32 0.0, %v488
    %490 = vmatprep.mubr.f32.mxu0 0.0
    %491 = vmatmul.mubr.f32.gmra.mxu0 %v343
    %v492 = vpop.f32.mrf.mxu0
    %v493 = vadd.f32 0.0, %v492
    %v494 = vpop.f32.mrf.mxu0
    %v495 = vadd.f32 0.0, %v494
    %496 = vmatprep.mubr.f32.mxu0 0.0
    %497 = vmatmul.mubr.f32.gmra.mxu0 %v346
    %v498 = vpop.f32.mrf.mxu0
    %v499 = vadd.f32 0.0, %v498
    %v500 = vpop.f32.mrf.mxu0
    %v501 = vadd.f32 0.0, %v500
    %502 = vmatprep.mubr.f32.mxu0 0.0
    %503 = vmatmul.mubr.f32.gmra.mxu0 %v349
    %v504 = vpop.f32.mrf.mxu0
    %v505 = vadd.f32 0.0, %v504
    %v506 = vpop.f32.mrf.mxu0
    %v507 = vadd.f32 0.0, %v506
    %508 = vmatprep.mubr.f32.mxu0 0.0
    %509 = vmatmul.mubr.f32.gmra.mxu0 %v352
    %v510 = vpop.f32.mrf.mxu0
    %v511 = vadd.f32 0.0, %v510
    %v512 = vpop.f32.mrf.mxu0
    %v513 = vadd.f32 0.0, %v512
    %514 = vdwg.mxu0
    %515 = vmatprep.subr.mxu0 0.0
    %516 = vmatpush1.msra.mxu0 0.0
    %517 = vmatprep.subr.mxu0 0.0
    %518 = vmatpush1.msra.mxu0 0.0
    %519 = vmatprep.subr.mxu0 0.0
    %520 = vmatpush1.msra.mxu0 0.0
    %521 = vmatprep.subr.mxu0 0.0
    %522 = vmatpush1.msra.mxu0 0.0
    %523 = vmatprep.subr.mxu0 0.0
    %524 = vmatpush1.msra.mxu0 0.0
    %525 = vmatprep.subr.mxu0 0.0
    %526 = vmatpush1.msra.mxu0 0.0
    %527 = vmatprep.subr.mxu0 0.0
    %528 = vmatpush1.msra.mxu0 0.0
    %529 = vmatprep.subr.mxu0 0.0
    %530 = vmatpush1.msra.mxu0 0.0
    %531 = vmatprep.subr.mxu0 0.0
    %532 = vmatpush1.msra.mxu0 0.0
    %533 = vmatprep.subr.mxu0 0.0
    %534 = vmatpush1.msra.mxu0 0.0
    %535 = vmatprep.subr.mxu0 0.0
    %536 = vmatpush1.msra.mxu0 0.0
    %537 = vmatprep.subr.mxu0 0.0
    %538 = vmatpush1.msra.mxu0 0.0
    %539 = vmatprep.subr.mxu0 %v172
    %540 = vmatpush1.msra.mxu0 %v171
    %541 = vmatprep.subr.mxu0 %v168
    %542 = vmatpush1.msra.mxu0 %v167
    %543 = vmatprep.subr.mxu0 %v164
    %544 = vmatpush1.msra.mxu0 %v163
    %545 = vmatprep.subr.mxu0 %v160
    %546 = vmatpush1.msra.mxu0 %v159
    %547 = vmatprep.subr.mxu0 0.0
    %548 = vmatpush2.msra.mxu0 0.0
    %549 = vmatprep.subr.mxu0 0.0
    %550 = vmatpush2.msra.mxu0 0.0
    %551 = vmatprep.subr.mxu0 0.0
    %552 = vmatpush2.msra.mxu0 0.0
    %553 = vmatprep.subr.mxu0 0.0
    %554 = vmatpush2.msra.mxu0 0.0
    %555 = vmatprep.subr.mxu0 0.0
    %556 = vmatpush2.msra.mxu0 0.0
    %557 = vmatprep.subr.mxu0 0.0
    %558 = vmatpush2.msra.mxu0 0.0
    %559 = vmatprep.subr.mxu0 0.0
    %560 = vmatpush2.msra.mxu0 0.0
    %561 = vmatprep.subr.mxu0 0.0
    %562 = vmatpush2.msra.mxu0 0.0
    %563 = vmatprep.subr.mxu0 0.0
    %564 = vmatpush2.msra.mxu0 0.0
    %565 = vmatprep.subr.mxu0 0.0
    %566 = vmatpush2.msra.mxu0 0.0
    %567 = vmatprep.subr.mxu0 0.0
    %568 = vmatpush2.msra.mxu0 0.0
    %569 = vmatprep.subr.mxu0 0.0
    %570 = vmatpush2.msra.mxu0 0.0
    %571 = vmatprep.subr.mxu0 0.0
    %572 = vmatpush2.msra.mxu0 0.0
    %573 = vmatprep.subr.mxu0 0.0
    %574 = vmatpush2.msra.mxu0 0.0
    %575 = vmatprep.subr.mxu0 0.0
    %576 = vmatpush2.msra.mxu0 0.0
    %577 = vmatprep.subr.mxu0 0.0
    %578 = vmatpush2.msra.mxu0 0.0
    %579 = vmatprep.mubr.f32.mxu0 0.0
    %580 = vmatmul.mubr.f32.gmra.mxu0 %v307
    %v581 = vpop.f32.mrf.mxu0
    %v582 = vadd.f32 0.0, %v581
    %v583 = vpop.f32.mrf.mxu0
    %v584 = vadd.f32 0.0, %v583
    %585 = vmatprep.mubr.f32.mxu0 0.0
    %586 = vmatmul.mubr.f32.gmra.mxu0 %v310
    %v587 = vpop.f32.mrf.mxu0
    %v588 = vadd.f32 0.0, %v587
    %v589 = vpop.f32.mrf.mxu0
    %v590 = vadd.f32 0.0, %v589
    %591 = vmatprep.mubr.f32.mxu0 0.0
    %592 = vmatmul.mubr.f32.gmra.mxu0 %v313
    %v593 = vpop.f32.mrf.mxu0
    %v594 = vadd.f32 0.0, %v593
    %v595 = vpop.f32.mrf.mxu0
    %v596 = vadd.f32 0.0, %v595
    %597 = vmatprep.mubr.f32.mxu0 0.0
    %598 = vmatmul.mubr.f32.gmra.mxu0 %v316
    %v599 = vpop.f32.mrf.mxu0
    %v600 = vadd.f32 0.0, %v599
    %v601 = vpop.f32.mrf.mxu0
    %v602 = vadd.f32 0.0, %v601
    %603 = vmatprep.mubr.f32.mxu0 0.0
    %604 = vmatmul.mubr.f32.gmra.mxu0 %v319
    %v605 = vpop.f32.mrf.mxu0
    %v606 = vadd.f32 0.0, %v605
    %v607 = vpop.f32.mrf.mxu0
    %v608 = vadd.f32 0.0, %v607
    %609 = vmatprep.mubr.f32.mxu0 0.0
    %610 = vmatmul.mubr.f32.gmra.mxu0 %v322
    %v611 = vpop.f32.mrf.mxu0
    %v612 = vadd.f32 0.0, %v611
    %v613 = vpop.f32.mrf.mxu0
    %v614 = vadd.f32 0.0, %v613
    %615 = vmatprep.mubr.f32.mxu0 0.0
    %616 = vmatmul.mubr.f32.gmra.mxu0 %v325
    %v617 = vpop.f32.mrf.mxu0
    %v618 = vadd.f32 0.0, %v617
    %v619 = vpop.f32.mrf.mxu0
    %v620 = vadd.f32 0.0, %v619
    %621 = vmatprep.mubr.f32.mxu0 0.0
    %622 = vmatmul.mubr.f32.gmra.mxu0 %v328
    %v623 = vpop.f32.mrf.mxu0
    %v624 = vadd.f32 0.0, %v623
    %v625 = vpop.f32.mrf.mxu0
    %v626 = vadd.f32 0.0, %v625
    %627 = vmatprep.mubr.f32.mxu0 0.0
    %628 = vmatmul.mubr.f32.gmra.mxu0 %v331
    %v629 = vpop.f32.mrf.mxu0
    %v630 = vadd.f32 0.0, %v629
    %v631 = vpop.f32.mrf.mxu0
    %v632 = vadd.f32 0.0, %v631
    %633 = vmatprep.mubr.f32.mxu0 0.0
    %634 = vmatmul.mubr.f32.gmra.mxu0 %v334
    %v635 = vpop.f32.mrf.mxu0
    %v636 = vadd.f32 0.0, %v635
    %v637 = vpop.f32.mrf.mxu0
    %v638 = vadd.f32 0.0, %v637
    %639 = vmatprep.mubr.f32.mxu0 0.0
    %640 = vmatmul.mubr.f32.gmra.mxu0 %v337
    %v641 = vpop.f32.mrf.mxu0
    %v642 = vadd.f32 0.0, %v641
    %v643 = vpop.f32.mrf.mxu0
    %v644 = vadd.f32 0.0, %v643
    %645 = vmatprep.mubr.f32.mxu0 0.0
    %646 = vmatmul.mubr.f32.gmra.mxu0 %v340
    %v647 = vpop.f32.mrf.mxu0
    %v648 = vadd.f32 0.0, %v647
    %v649 = vpop.f32.mrf.mxu0
    %v650 = vadd.f32 0.0, %v649
    %651 = vmatprep.mubr.f32.mxu0 0.0
    %652 = vmatmul.mubr.f32.gmra.mxu0 %v343
    %v653 = vpop.f32.mrf.mxu0
    %v654 = vadd.f32 0.0, %v653
    %v655 = vpop.f32.mrf.mxu0
    %v656 = vadd.f32 0.0, %v655
    %657 = vmatprep.mubr.f32.mxu0 0.0
    %658 = vmatmul.mubr.f32.gmra.mxu0 %v346
    %v659 = vpop.f32.mrf.mxu0
    %v660 = vadd.f32 0.0, %v659
    %v661 = vpop.f32.mrf.mxu0
    %v662 = vadd.f32 0.0, %v661
    %663 = vmatprep.mubr.f32.mxu0 0.0
    %664 = vmatmul.mubr.f32.gmra.mxu0 %v349
    %v665 = vpop.f32.mrf.mxu0
    %v666 = vadd.f32 0.0, %v665
    %v667 = vpop.f32.mrf.mxu0
    %v668 = vadd.f32 0.0, %v667
    %669 = vmatprep.mubr.f32.mxu0 0.0
    %670 = vmatmul.mubr.f32.gmra.mxu0 %v352
    %v671 = vpop.f32.mrf.mxu0
    %v672 = vadd.f32 0.0, %v671
    %v673 = vpop.f32.mrf.mxu0
    %v674 = vadd.f32 0.0, %v673
    %675 = vdwg.mxu0
    %v676 = vmul.f32 %v421, %v273
    %v677 = vmul.f32 %v423, %v274
    %v678 = vmul.f32 %v582, %v275
    %v679 = vmul.f32 %v584, %v276
    %v680 = vmul.f32 %v427, %v277
    %v681 = vmul.f32 %v429, %v278
    %v682 = vmul.f32 %v588, %v279
    %v683 = vmul.f32 %v590, %v280
    %v684 = vmul.f32 %v433, %v281
    %v685 = vmul.f32 %v435, %v282
    %v686 = vmul.f32 %v594, %v283
    %v687 = vmul.f32 %v596, %v284
    %v688 = vmul.f32 %v439, %v285
    %v689 = vmul.f32 %v441, %v286
    %v690 = vmul.f32 %v600, %v287
    %v691 = vmul.f32 %v602, %v288
    %v692 = vadd.f32 %v676, %v680
    %v693 = vadd.f32 %v692, %v684
    %v694 = vadd.f32 %v693, %v688
    %v695 = vrot.slane %v694, 4
    %v696 = vadd.f32 %v694, %v695
    %v697 = vrot.slane %v696, 2
    %v698 = vadd.f32 %v696, %v697
    %v699 = vrot.slane %v698, 1
    %v700 = vadd.f32 %v698, %v699
    %v701 = vadd.f32 %v677, %v681
    %v702 = vadd.f32 %v701, %v685
    %v703 = vadd.f32 %v702, %v689
    %v704 = vrot.slane %v703, 4
    %v705 = vadd.f32 %v703, %v704
    %v706 = vrot.slane %v705, 2
    %v707 = vadd.f32 %v705, %v706
    %v708 = vrot.slane %v707, 1
    %v709 = vadd.f32 %v707, %v708
    %v710 = vadd.f32 %v678, %v682
    %v711 = vadd.f32 %v710, %v686
    %v712 = vadd.f32 %v711, %v690
    %v713 = vrot.slane %v712, 4
    %v714 = vadd.f32 %v712, %v713
    %v715 = vrot.slane %v714, 2
    %v716 = vadd.f32 %v714, %v715
    %v717 = vrot.slane %v716, 1
    %v718 = vadd.f32 %v716, %v717
    %v719 = vadd.f32 %v679, %v683
    %v720 = vadd.f32 %v719, %v687
    %v721 = vadd.f32 %v720, %v691
    %v722 = vrot.slane %v721, 4
    %v723 = vadd.f32 %v721, %v722
    %v724 = vrot.slane %v723, 2
    %v725 = vadd.f32 %v723, %v724
    %v726 = vrot.slane %v725, 1
    %v727 = vadd.f32 %v725, %v726
    %v728 = vmul.f32 %v445, %v273
    %v729 = vmul.f32 %v447, %v274
    %v730 = vmul.f32 %v606, %v275
    %v731 = vmul.f32 %v608, %v276
    %v732 = vmul.f32 %v451, %v277
    %v733 = vmul.f32 %v453, %v278
    %v734 = vmul.f32 %v612, %v279
    %v735 = vmul.f32 %v614, %v280
    %v736 = vmul.f32 %v457, %v281
    %v737 = vmul.f32 %v459, %v282
    %v738 = vmul.f32 %v618, %v283
    %v739 = vmul.f32 %v620, %v284
    %v740 = vmul.f32 %v463, %v285
    %v741 = vmul.f32 %v465, %v286
    %v742 = vmul.f32 %v624, %v287
    %v743 = vmul.f32 %v626, %v288
    %v744 = vadd.f32 %v728, %v732
    %v745 = vadd.f32 %v744, %v736
    %v746 = vadd.f32 %v745, %v740
    %v747 = vrot.slane %v746, 4
    %v748 = vadd.f32 %v746, %v747
    %v749 = vrot.slane %v748, 2
    %v750 = vadd.f32 %v748, %v749
    %v751 = vrot.slane %v750, 1
    %v752 = vadd.f32 %v750, %v751
    %v753 = vadd.f32 %v729, %v733
    %v754 = vadd.f32 %v753, %v737
    %v755 = vadd.f32 %v754, %v741
    %v756 = vrot.slane %v755, 4
    %v757 = vadd.f32 %v755, %v756
    %v758 = vrot.slane %v757, 2
    %v759 = vadd.f32 %v757, %v758
    %v760 = vrot.slane %v759, 1
    %v761 = vadd.f32 %v759, %v760
    %v762 = vadd.f32 %v730, %v734
    %v763 = vadd.f32 %v762, %v738
    %v764 = vadd.f32 %v763, %v742
    %v765 = vrot.slane %v764, 4
    %v766 = vadd.f32 %v764, %v765
    %v767 = vrot.slane %v766, 2
    %v768 = vadd.f32 %v766, %v767
    %v769 = vrot.slane %v768, 1
    %v770 = vadd.f32 %v768, %v769
    %v771 = vadd.f32 %v731, %v735
    %v772 = vadd.f32 %v771, %v739
    %v773 = vadd.f32 %v772, %v743
    %v774 = vrot.slane %v773, 4
    %v775 = vadd.f32 %v773, %v774
    %v776 = vrot.slane %v775, 2
    %v777 = vadd.f32 %v775, %v776
    %v778 = vrot.slane %v777, 1
    %v779 = vadd.f32 %v777, %v778
    %v780 = vmul.f32 %v469, %v273
    %v781 = vmul.f32 %v471, %v274
    %v782 = vmul.f32 %v630, %v275
    %v783 = vmul.f32 %v632, %v276
    %v784 = vmul.f32 %v475, %v277
    %v785 = vmul.f32 %v477, %v278
    %v786 = vmul.f32 %v636, %v279
    %v787 = vmul.f32 %v638, %v280
    %v788 = vmul.f32 %v481, %v281
    %v789 = vmul.f32 %v483, %v282
    %v790 = vmul.f32 %v642, %v283
    %v791 = vmul.f32 %v644, %v284
    %v792 = vmul.f32 %v487, %v285
    %v793 = vmul.f32 %v489, %v286
    %v794 = vmul.f32 %v648, %v287
    %v795 = vmul.f32 %v650, %v288
    %v796 = vadd.f32 %v780, %v784
    %v797 = vadd.f32 %v796, %v788
    %v798 = vadd.f32 %v797, %v792
    %v799 = vrot.slane %v798, 4
    %v800 = vadd.f32 %v798, %v799
    %v801 = vrot.slane %v800, 2
    %v802 = vadd.f32 %v800, %v801
    %v803 = vrot.slane %v802, 1
    %v804 = vadd.f32 %v802, %v803
    %v805 = vadd.f32 %v781, %v785
    %v806 = vadd.f32 %v805, %v789
    %v807 = vadd.f32 %v806, %v793
    %v808 = vrot.slane %v807, 4
    %v809 = vadd.f32 %v807, %v808
    %v810 = vrot.slane %v809, 2
    %v811 = vadd.f32 %v809, %v810
    %v812 = vrot.slane %v811, 1
    %v813 = vadd.f32 %v811, %v812
    %v814 = vadd.f32 %v782, %v786
    %v815 = vadd.f32 %v814, %v790
    %v816 = vadd.f32 %v815, %v794
    %v817 = vrot.slane %v816, 4
    %v818 = vadd.f32 %v816, %v817
    %v819 = vrot.slane %v818, 2
    %v820 = vadd.f32 %v818, %v819
    %v821 = vrot.slane %v820, 1
    %v822 = vadd.f32 %v820, %v821
    %v823 = vadd.f32 %v783, %v787
    %v824 = vadd.f32 %v823, %v791
    %v825 = vadd.f32 %v824, %v795
    %v826 = vrot.slane %v825, 4
    %v827 = vadd.f32 %v825, %v826
    %v828 = vrot.slane %v827, 2
    %v829 = vadd.f32 %v827, %v828
    %v830 = vrot.slane %v829, 1
    %v831 = vadd.f32 %v829, %v830
    %v832 = vmul.f32 %v493, %v273
    %v833 = vmul.f32 %v495, %v274
    %v834 = vmul.f32 %v654, %v275
    %v835 = vmul.f32 %v656, %v276
    %v836 = vmul.f32 %v499, %v277
    %v837 = vmul.f32 %v501, %v278
    %v838 = vmul.f32 %v660, %v279
    %v839 = vmul.f32 %v662, %v280
    %v840 = vmul.f32 %v505, %v281
    %v841 = vmul.f32 %v507, %v282
    %v842 = vmul.f32 %v666, %v283
    %v843 = vmul.f32 %v668, %v284
    %v844 = vmul.f32 %v511, %v285
    %v845 = vmul.f32 %v513, %v286
    %v846 = vmul.f32 %v672, %v287
    %v847 = vmul.f32 %v674, %v288
    %v848 = vadd.f32 %v832, %v836
    %v849 = vadd.f32 %v848, %v840
    %v850 = vadd.f32 %v849, %v844
    %v851 = vrot.slane %v850, 4
    %v852 = vadd.f32 %v850, %v851
    %v853 = vrot.slane %v852, 2
    %v854 = vadd.f32 %v852, %v853
    %v855 = vrot.slane %v854, 1
    %v856 = vadd.f32 %v854, %v855
    %v857 = vadd.f32 %v833, %v837
    %v858 = vadd.f32 %v857, %v841
    %v859 = vadd.f32 %v858, %v845
    %v860 = vrot.slane %v859, 4
    %v861 = vadd.f32 %v859, %v860
    %v862 = vrot.slane %v861, 2
    %v863 = vadd.f32 %v861, %v862
    %v864 = vrot.slane %v863, 1
    %v865 = vadd.f32 %v863, %v864
    %v866 = vadd.f32 %v834, %v838
    %v867 = vadd.f32 %v866, %v842
    %v868 = vadd.f32 %v867, %v846
    %v869 = vrot.slane %v868, 4
    %v870 = vadd.f32 %v868, %v869
    %v871 = vrot.slane %v870, 2
    %v872 = vadd.f32 %v870, %v871
    %v873 = vrot.slane %v872, 1
    %v874 = vadd.f32 %v872, %v873
    %v875 = vadd.f32 %v835, %v839
    %v876 = vadd.f32 %v875, %v843
    %v877 = vadd.f32 %v876, %v847
    %v878 = vrot.slane %v877, 4
    %v879 = vadd.f32 %v877, %v878
    %v880 = vrot.slane %v879, 2
    %v881 = vadd.f32 %v879, %v880
    %v882 = vrot.slane %v881, 1
    %v883 = vadd.f32 %v881, %v882
    %vm884 = vcmask 1040384
    %v885 = vsel %vm884, %v700, %v752
    %v886 = vsel %vm884, %v709, %v761
    %v887 = vsel %vm884, %v718, %v770
    %v888 = vsel %vm884, %v727, %v779
    %vm889 = vcmask 1041408
    %v890 = vsel %vm889, %v885, %v804
    %v891 = vsel %vm889, %v886, %v813
    %v892 = vsel %vm889, %v887, %v822
    %v893 = vsel %vm889, %v888, %v831
    %vm894 = vcmask 1042432
    %v895 = vsel %vm894, %v890, %v856
    %v896 = vsel %vm894, %v891, %v865
    %v897 = vsel %vm894, %v892, %v874
    %v898 = vsel %vm894, %v893, %v883
    %vm899 = vcmask 1043456
    %v900 = vsel %vm899, %v895, 0.0
    %v901 = vsel %vm899, %v896, 0.0
    %v902 = vsel %vm899, %v897, 0.0
    %v903 = vsel %vm899, %v898, 0.0
    %904 = vst [vmem:[#allocation2] sm:$0xff] %v900
    %905 = vst [vmem:[#allocation2 + $0x8] sm:$0xff] %v901
    %906 = vst [vmem:[#allocation2 + $0x10] sm:$0xff] %v902
    %907 = vst [vmem:[#allocation2 + $0x18] sm:$0xff] %v903
    // Predicated region
    $region14: #{tpu_custom_call.1} parent=1 // pred_check
      _
    $region15: #{tpu_custom_call.1} parent=1 // pred_check_branch
      %909 = sbr.rel (0) target = $region17
    $region16: #{tpu_custom_call.1} parent=1 // pred_region
      %s911 = ssub.s32 512, 512
      %912 = vsyncadd [#allocation3], %s911
      %s914 = sshll.u32 [#allocation2], 4
      %s915 = int_to_ptr.vmem [resolvable:$true] %s914
      %917 = dma.vmem_to_hbm [thread:$0]  %s915, 512, %s3, [#allocation3]
    $region17: #{tpu_custom_call.1} parent=1 // pred_fallthru
      _
    // Predicated region
    $region18: #{tpu_custom_call.1} parent=1 // pred_check
      _
    $region19: #{tpu_custom_call.1} parent=1 // pred_check_branch
      %919 = sbr.rel (0) target = $region21
    $region20: #{tpu_custom_call.1} parent=1 // pred_region
      %920 = dma.done [#allocation3], 512
    $region21: #{tpu_custom_call.1} parent=1 // pred_fallthru
      _
    %921 = vsyncpa [#allocation3], 1

</llo_original>
